<compile_context>
chip_gen: v6e
topology: v6e:2x2x1
jax: 0.10.0
libtpu: 0.0.40
codegen_flags: <defaults>
</compile_context>

<pallas_src>
import functools

import jax
import jax.numpy as jnp
from jax.experimental import pallas as pl
from jax.experimental.pallas import tpu as pltpu


def _leaky_relu(x, slope=0.2):
    return jnp.where(x > 0, x, slope * x)


def _round_up(n, m):
    return ((n + m - 1) // m) * m


# ----------------------------------------------------------------------------
# Kernel
# ----------------------------------------------------------------------------
def encoder_kernel(x_ref,
                   w1_ref, b1_ref,
                   w2_ref, b2_ref,
                   w3_ref, b3_ref,
                   w4_ref, b4_ref,
                   wh_ref, bh_ref,
                   out_ref):
    cdt = w1_ref.dtype            # MXU input dtype (bf16 default, f32 optional)
    x = x_ref[...].astype(cdt)    # x arrives f32 from HBM; cast rides free on VPU

    # fc1 + LeakyReLU (bias add / activation in f32 VPU slots)
    h = jnp.dot(x, w1_ref[...], preferred_element_type=jnp.float32) + b1_ref[...]
    h = _leaky_relu(h)

    # fc2..fc4 with residual connections; MXU inputs in cdt, f32 accumulation
    h2 = jnp.dot(h.astype(cdt), w2_ref[...],
                 preferred_element_type=jnp.float32) + b2_ref[...]
    h = _leaky_relu(h2) + h
    h3 = jnp.dot(h.astype(cdt), w3_ref[...],
                 preferred_element_type=jnp.float32) + b3_ref[...]
    h = _leaky_relu(h3) + h
    h4 = jnp.dot(h.astype(cdt), w4_ref[...],
                 preferred_element_type=jnp.float32) + b4_ref[...]
    h = _leaky_relu(h4) + h

    # fused mean/logvar head: one matmul, one (2*latent_dim)-wide store
    out = jnp.dot(h.astype(cdt), wh_ref[...],
                  preferred_element_type=jnp.float32) + bh_ref[...]
    out_ref[...] = out.astype(out_ref.dtype)


# ----------------------------------------------------------------------------
# Buffered(1) support probe (narrow guard: only this tiny probe is try/except'd,
# never the real kernel execution).
# ----------------------------------------------------------------------------
@functools.lru_cache(maxsize=None)
def _buffered_single_supported():
    if not hasattr(pl, "Buffered"):
        return False

    def probe_kernel(x_ref, o_ref):
        o_ref[...] = x_ref[...]

    try:
        fn = pl.pallas_call(
            probe_kernel,
            out_shape=jax.ShapeDtypeStruct((16, 128), jnp.float32),
            grid=(2,),
            in_specs=[pl.BlockSpec((8, 128), lambda i: (0, 0),
                                   pipeline_mode=pl.Buffered(1))],
            out_specs=pl.BlockSpec((8, 128), lambda i: (i, 0)),
        )
        jax.block_until_ready(fn(jnp.zeros((8, 128), jnp.float32)))
        return True
    except Exception:
        return False


# ----------------------------------------------------------------------------
# pallas_call builder
# ----------------------------------------------------------------------------
def _vmem_limit_bytes(tile_b, input_dim, hidden_dim, head_cols, weight_bytes,
                      single_buffer):
    wbuf = 1 if single_buffer else 2
    io = 2 * tile_b * input_dim * 4 + 2 * tile_b * head_cols * 4   # dbl-buffered x / out
    inter = 8 * tile_b * hidden_dim * 4                            # live f32 intermediates
    need = io + wbuf * weight_bytes + inter
    # generous headroom; cap below v7x's 64 MiB physical VMEM
    return int(min(max(2 * need, 32 << 20), 56 << 20))


def _build_call(Bp, input_dim, hidden_dim, head_cols, weight_arrays, tile_b,
                single_buffer_weights):
    def row_spec(cols):
        return pl.BlockSpec((tile_b, cols), lambda i: (i, 0))

    def const_spec(shape):
        # Grid-invariant operand (block index never changes across the grid).
        if single_buffer_weights:
            return pl.BlockSpec(shape, lambda i: (0, 0),
                                pipeline_mode=pl.Buffered(1))
        return pl.BlockSpec(shape, lambda i: (0, 0))

    weight_bytes = sum(a.size * a.dtype.itemsize for a in weight_arrays)
    in_specs = [row_spec(input_dim)] + [const_spec(a.shape) for a in weight_arrays]
    out_specs = row_spec(head_cols)
    out_shape = jax.ShapeDtypeStruct((Bp, head_cols), jnp.float32)

    return pl.pallas_call(
        encoder_kernel,
        out_shape=out_shape,
        grid_spec=pltpu.PrefetchScalarGridSpec(
            num_scalar_prefetch=0,
            grid=(Bp // tile_b,),
            in_specs=in_specs,
            out_specs=out_specs,
        ),
        compiler_params=pltpu.CompilerParams(
            dimension_semantics=("parallel",),
            vmem_limit_bytes=_vmem_limit_bytes(
                tile_b, input_dim, hidden_dim, head_cols, weight_bytes,
                single_buffer_weights),
        ),
    )


# ----------------------------------------------------------------------------
# Public wrapper
# ----------------------------------------------------------------------------
def encoder_exp(x, params, *, tile_b=2048, compute_dtype=jnp.bfloat16):
    B, input_dim = x.shape
    hidden_dim = params["w1"].shape[1]
    latent_dim = params["wm"].shape[1]
    head_cols = 2 * latent_dim

    # ---- host-side packing (cheap, once per call) -------------------------
    # Fuse mean/logvar heads into one (hidden, 2*latent) weight: one head
    # matmul, one narrow output slab (no 128-lane zero padding).
    wh = jnp.concatenate([params["wm"], params["wl"]], axis=1).astype(compute_dtype)
    bh = jnp.concatenate([params["bm"], params["bl"]], axis=1).astype(jnp.float32)

    flat = []
    for i in (1, 2, 3, 4):
        flat.append(params[f"w{i}"].astype(compute_dtype))
        flat.append(params[f"b{i}"].astype(jnp.float32))
    flat += [wh, bh]

    # ---- batch tiling: large tiles, >=2 grid steps when splittable, minimal
    # padding (<= 8 rows) --------------------------------------------------
    tile_cap = max(8, _round_up(int(tile_b), 8))
    Bp8 = _round_up(B, 8)
    min_grid = 2 if Bp8 >= 16 else 1          # keep both v7x TCs busy
    grid_n = max(min_grid, pl.cdiv(Bp8, tile_cap))
    tile_b = _round_up(pl.cdiv(Bp8, grid_n), 8)
    Bp = tile_b * grid_n

    # x stays f32 (kernel casts to the MXU dtype on the VPU); pad batch only.
    x_p = x.astype(jnp.float32)
    if Bp != B:
        x_p = jnp.pad(x_p, ((0, Bp - B), (0, 0)))

    call = _build_call(Bp, input_dim, hidden_dim, head_cols, flat, tile_b,
                       single_buffer_weights=_buffered_single_supported())
    out = call(x_p, *flat)

    mean = out[:B, :latent_dim]
    logvar = out[:B, latent_dim:head_cols]
    return mean, logvar


# ----------------------------------------------------------------------------
# Parameter init mirroring the PyTorch module
# ----------------------------------------------------------------------------
def init_params(key, input_dim, hidden_dim, latent_dim):
    """xavier_normal_ weights (gain=calculate_gain('leaky_relu')) + default
    nn.Linear uniform bias init."""
    def xavier_normal(k, fan_in, fan_out, gain):
        std = gain * jnp.sqrt(2.0 / (fan_in + fan_out))
        # stored as (in, out) so the kernel computes x @ W
        return std * jax.random.normal(k, (fan_in, fan_out), jnp.float32)

    def bias(k, fan_in, fan_out):
        bound = 1.0 / jnp.sqrt(fan_in)
        return jax.random.uniform(k, (1, fan_out), jnp.float32, -bound, bound)

    # PyTorch calculate_gain('leaky_relu') with default negative_slope=0.01
    gain = float(jnp.sqrt(2.0 / (1.0 + 0.01 ** 2)))
    keys = jax.random.split(key, 12)
    return {
        "w1": xavier_normal(keys[0], input_dim, hidden_dim, gain),
        "b1": bias(keys[1], input_dim, hidden_dim),
        "w2": xavier_normal(keys[2], hidden_dim, hidden_dim, gain),
        "b2": bias(keys[3], hidden_dim, hidden_dim),
        "w3": xavier_normal(keys[4], hidden_dim, hidden_dim, gain),
        "b3": bias(keys[5], hidden_dim, hidden_dim),
        "w4": xavier_normal(keys[6], hidden_dim, hidden_dim, gain),
        "b4": bias(keys[7], hidden_dim, hidden_dim),
        "wm": xavier_normal(keys[8], hidden_dim, latent_dim, 1.0),
        "bm": bias(keys[9], hidden_dim, latent_dim),
        "wl": xavier_normal(keys[10], hidden_dim, latent_dim, 1.0),
        "bl": bias(keys[11], hidden_dim, latent_dim),
    }


def encoder_exp_ref(x, p, compute_dtype=jnp.float32):
    """Pure-JAX reference mirroring the kernel's matmul-input dtype."""
    cdt = compute_dtype

    def lin(a, w, b):
        return jnp.dot(a.astype(cdt), w.astype(cdt),
                       preferred_element_type=jnp.float32) + b

    h = _leaky_relu(lin(x, p["w1"], p["b1"]))
    h = _leaky_relu(lin(h, p["w2"], p["b2"])) + h
    h = _leaky_relu(lin(h, p["w3"], p["b3"])) + h
    h = _leaky_relu(lin(h, p["w4"], p["b4"])) + h
    return lin(h, p["wm"], p["bm"]), lin(h, p["wl"], p["bl"])


if __name__ == "__main__":
    input_dim, hidden_dim, latent_dim = 16, 32, 8
    batch = 200  # deliberately NOT a multiple of 8*k tiles -> exercises padding

    key = jax.random.PRNGKey(0)
    kx, kp = jax.random.split(key)
    x = jax.random.normal(kx, (batch, input_dim), jnp.float32)
    params = init_params(kp, input_dim, hidden_dim, latent_dim)

    # f32 compute path: tight check against the pure-f32 reference
    mean32, logvar32 = jax.block_until_ready(
        encoder_exp(x, params, compute_dtype=jnp.float32))
    mref32, lref32 = encoder_exp_ref(x, params, jnp.float32)
    assert jnp.allclose(mean32, mref32, atol=1e-5, rtol=1e-5)
    assert jnp.allclose(logvar32, lref32, atol=1e-5, rtol=1e-5)

    # default bf16-matmul / f32-accumulate path vs a dtype-matched reference
    mean, logvar = jax.block_until_ready(encoder_exp(x, params))
    mref, lref = encoder_exp_ref(x, params, jnp.bfloat16)
    assert jnp.allclose(mean, mref, atol=2e-3, rtol=2e-3)
    assert jnp.allclose(logvar, lref, atol=2e-3, rtol=2e-3)

    print("KERNEL_OK")
</pallas_src>

<mosaic_0001>
module attributes {stable_mosaic.version = 11 : i64} {
  func.func @probe_kernel(%arg0: i32, %arg1: memref<8x128xf32, #tpu.memory_space<vmem>>, %arg2: memref<8x128xf32, #tpu.memory_space<vmem>>) attributes {dimension_semantics = [#tpu.dimension_semantics<arbitrary>], iteration_bounds = array<i64: 2>, scalar_prefetch = 0 : i64, scratch_operands = 0 : i64, tpu.core_type = #tpu.core_type<tc>, window_params = [{pipeline_mode = #tpu.pipeline_mode<synchronous>, transform_indices = @transform_0, window_bounds = array<i64: 8, 128>}, {transform_indices = @transform_1, window_bounds = array<i64: 8, 128>}]} {
    %c0 = arith.constant 0 : index
    %c0_0 = arith.constant 0 : index
    %0 = vector.load %arg1[%c0, %c0_0] : memref<8x128xf32, #tpu.memory_space<vmem>>, vector<8x128xf32>
    %c0_1 = arith.constant 0 : index
    %c0_2 = arith.constant 0 : index
    %1 = vector.load %arg2[%c0_1, %c0_2] : memref<8x128xf32, #tpu.memory_space<vmem>>, vector<8x128xf32>
    tpu.vector_store %arg2[%c0_1, %c0_2], %0 {strides = array<i32>} : memref<8x128xf32, #tpu.memory_space<vmem>>, vector<8x128xf32>,
    return
  }
  func.func @transform_0(%arg0: i32) -> (i32, i32) {
    %c0_i32 = arith.constant 0 : i32
    %c0_i32_0 = arith.constant 0 : i32
    %c0_i32_1 = arith.constant 0 : i32
    return %c0_i32, %c0_i32_0 : i32, i32
  }
  func.func @transform_1(%arg0: i32) -> (i32, i32) {
    %c0_i32 = arith.constant 0 : i32
    %c0_i32_0 = arith.constant 0 : i32
    return %arg0, %c0_i32 : i32, i32
  }
}

module attributes {stable_mosaic.version = 11 : i64} {
  func.func @encoder_kernel(%arg0: i32, %arg1: memref<104x16xf32, #tpu.memory_space<vmem>>, %arg2: memref<16x32xf32, #tpu.memory_space<vmem>>, %arg3: memref<1x32xf32, #tpu.memory_space<vmem>>, %arg4: memref<32x32xf32, #tpu.memory_space<vmem>>, %arg5: memref<1x32xf32, #tpu.memory_space<vmem>>, %arg6: memref<32x32xf32, #tpu.memory_space<vmem>>, %arg7: memref<1x32xf32, #tpu.memory_space<vmem>>, %arg8: memref<32x32xf32, #tpu.memory_space<vmem>>, %arg9: memref<1x32xf32, #tpu.memory_space<vmem>>, %arg10: memref<32x16xf32, #tpu.memory_space<vmem>>, %arg11: memref<1x16xf32, #tpu.memory_space<vmem>>, %arg12: memref<104x16xf32, #tpu.memory_space<vmem>>) attributes {dimension_semantics = [#tpu.dimension_semantics<parallel>], iteration_bounds = array<i64: 2>, scalar_prefetch = 0 : i64, scratch_operands = 0 : i64, tpu.core_type = #tpu.core_type<tc>, window_params = [{transform_indices = @transform_0, window_bounds = array<i64: 104, 16>}, {pipeline_mode = #tpu.pipeline_mode<synchronous>, transform_indices = @transform_1, window_bounds = array<i64: 16, 32>}, {pipeline_mode = #tpu.pipeline_mode<synchronous>, transform_indices = @transform_2, window_bounds = array<i64: 1, 32>}, {pipeline_mode = #tpu.pipeline_mode<synchronous>, transform_indices = @transform_3, window_bounds = array<i64: 32, 32>}, {pipeline_mode = #tpu.pipeline_mode<synchronous>, transform_indices = @transform_4, window_bounds = array<i64: 1, 32>}, {pipeline_mode = #tpu.pipeline_mode<synchronous>, transform_indices = @transform_5, window_bounds = array<i64: 32, 32>}, {pipeline_mode = #tpu.pipeline_mode<synchronous>, transform_indices = @transform_6, window_bounds = array<i64: 1, 32>}, {pipeline_mode = #tpu.pipeline_mode<synchronous>, transform_indices = @transform_7, window_bounds = array<i64: 32, 32>}, {pipeline_mode = #tpu.pipeline_mode<synchronous>, transform_indices = @transform_8, window_bounds = array<i64: 1, 32>}, {pipeline_mode = #tpu.pipeline_mode<synchronous>, transform_indices = @transform_9, window_bounds = array<i64: 32, 16>}, {pipeline_mode = #tpu.pipeline_mode<synchronous>, transform_indices = @transform_10, window_bounds = array<i64: 1, 16>}, {transform_indices = @transform_11, window_bounds = array<i64: 104, 16>}]} {
    %c0 = arith.constant 0 : index
    %c0_0 = arith.constant 0 : index
    %0 = vector.load %arg1[%c0, %c0_0] : memref<104x16xf32, #tpu.memory_space<vmem>>, vector<104x16xf32>
    %c0_1 = arith.constant 0 : index
    %c0_2 = arith.constant 0 : index
    %1 = vector.load %arg2[%c0_1, %c0_2] : memref<16x32xf32, #tpu.memory_space<vmem>>, vector<16x32xf32>
    %cst = arith.constant dense<0.000000e+00> : vector<104x32xf32>
    %2 = tpu.matmul %0, %1, %cst {dimension_numbers = #tpu.dot_dimension_numbers<[1], [0], [0], [1], [0, 0, 1, 1], [], []>} : vector<104x16xf32>, vector<16x32xf32>, vector<104x32xf32> -> vector<104x32xf32>
    %c0_3 = arith.constant 0 : index
    %c0_4 = arith.constant 0 : index
    %3 = vector.load %arg3[%c0_3, %c0_4] : memref<1x32xf32, #tpu.memory_space<vmem>>, vector<1x32xf32>
    %4 = vector.broadcast %3 : vector<1x32xf32> to vector<104x32xf32>
    %5 = arith.addf %2, %4 : vector<104x32xf32>
    %cst_5 = arith.constant 0.000000e+00 : f32
    %6 = vector.broadcast %cst_5 : f32 to vector<104x32xf32>
    %7 = arith.cmpf ogt, %5, %6 : vector<104x32xf32>
    %cst_6 = arith.constant 2.000000e-01 : f32
    %8 = vector.broadcast %cst_6 : f32 to vector<104x32xf32>
    %9 = arith.mulf %8, %5 : vector<104x32xf32>
    %10 = arith.select %7, %5, %9 : vector<104x32xi1>, vector<104x32xf32>
    %c0_7 = arith.constant 0 : index
    %c0_8 = arith.constant 0 : index
    %11 = vector.load %arg4[%c0_7, %c0_8] : memref<32x32xf32, #tpu.memory_space<vmem>>, vector<32x32xf32>
    %cst_9 = arith.constant dense<0.000000e+00> : vector<104x32xf32>
    %12 = tpu.matmul %10, %11, %cst_9 {dimension_numbers = #tpu.dot_dimension_numbers<[1], [0], [0], [1], [0, 0, 1, 1], [], []>} : vector<104x32xf32>, vector<32x32xf32>, vector<104x32xf32> -> vector<104x32xf32>
    %c0_10 = arith.constant 0 : index
    %c0_11 = arith.constant 0 : index
    %13 = vector.load %arg5[%c0_10, %c0_11] : memref<1x32xf32, #tpu.memory_space<vmem>>, vector<1x32xf32>
    %14 = vector.broadcast %13 : vector<1x32xf32> to vector<104x32xf32>
    %15 = arith.addf %12, %14 : vector<104x32xf32>
    %cst_12 = arith.constant 0.000000e+00 : f32
    %16 = vector.broadcast %cst_12 : f32 to vector<104x32xf32>
    %17 = arith.cmpf ogt, %15, %16 : vector<104x32xf32>
    %cst_13 = arith.constant 2.000000e-01 : f32
    %18 = vector.broadcast %cst_13 : f32 to vector<104x32xf32>
    %19 = arith.mulf %18, %15 : vector<104x32xf32>
    %20 = arith.select %17, %15, %19 : vector<104x32xi1>, vector<104x32xf32>
    %21 = arith.addf %20, %10 : vector<104x32xf32>
    %c0_14 = arith.constant 0 : index
    %c0_15 = arith.constant 0 : index
    %22 = vector.load %arg6[%c0_14, %c0_15] : memref<32x32xf32, #tpu.memory_space<vmem>>, vector<32x32xf32>
    %cst_16 = arith.constant dense<0.000000e+00> : vector<104x32xf32>
    %23 = tpu.matmul %21, %22, %cst_16 {dimension_numbers = #tpu.dot_dimension_numbers<[1], [0], [0], [1], [0, 0, 1, 1], [], []>} : vector<104x32xf32>, vector<32x32xf32>, vector<104x32xf32> -> vector<104x32xf32>
    %c0_17 = arith.constant 0 : index
    %c0_18 = arith.constant 0 : index
    %24 = vector.load %arg7[%c0_17, %c0_18] : memref<1x32xf32, #tpu.memory_space<vmem>>, vector<1x32xf32>
    %25 = vector.broadcast %24 : vector<1x32xf32> to vector<104x32xf32>
    %26 = arith.addf %23, %25 : vector<104x32xf32>
    %cst_19 = arith.constant 0.000000e+00 : f32
    %27 = vector.broadcast %cst_19 : f32 to vector<104x32xf32>
    %28 = arith.cmpf ogt, %26, %27 : vector<104x32xf32>
    %cst_20 = arith.constant 2.000000e-01 : f32
    %29 = vector.broadcast %cst_20 : f32 to vector<104x32xf32>
    %30 = arith.mulf %29, %26 : vector<104x32xf32>
    %31 = arith.select %28, %26, %30 : vector<104x32xi1>, vector<104x32xf32>
    %32 = arith.addf %31, %21 : vector<104x32xf32>
    %c0_21 = arith.constant 0 : index
    %c0_22 = arith.constant 0 : index
    %33 = vector.load %arg8[%c0_21, %c0_22] : memref<32x32xf32, #tpu.memory_space<vmem>>, vector<32x32xf32>
    %cst_23 = arith.constant dense<0.000000e+00> : vector<104x32xf32>
    %34 = tpu.matmul %32, %33, %cst_23 {dimension_numbers = #tpu.dot_dimension_numbers<[1], [0], [0], [1], [0, 0, 1, 1], [], []>} : vector<104x32xf32>, vector<32x32xf32>, vector<104x32xf32> -> vector<104x32xf32>
    %c0_24 = arith.constant 0 : index
    %c0_25 = arith.constant 0 : index
    %35 = vector.load %arg9[%c0_24, %c0_25] : memref<1x32xf32, #tpu.memory_space<vmem>>, vector<1x32xf32>
    %36 = vector.broadcast %35 : vector<1x32xf32> to vector<104x32xf32>
    %37 = arith.addf %34, %36 : vector<104x32xf32>
    %cst_26 = arith.constant 0.000000e+00 : f32
    %38 = vector.broadcast %cst_26 : f32 to vector<104x32xf32>
    %39 = arith.cmpf ogt, %37, %38 : vector<104x32xf32>
    %cst_27 = arith.constant 2.000000e-01 : f32
    %40 = vector.broadcast %cst_27 : f32 to vector<104x32xf32>
    %41 = arith.mulf %40, %37 : vector<104x32xf32>
    %42 = arith.select %39, %37, %41 : vector<104x32xi1>, vector<104x32xf32>
    %43 = arith.addf %42, %32 : vector<104x32xf32>
    %c0_28 = arith.constant 0 : index
    %c0_29 = arith.constant 0 : index
    %44 = vector.load %arg10[%c0_28, %c0_29] : memref<32x16xf32, #tpu.memory_space<vmem>>, vector<32x16xf32>
    %cst_30 = arith.constant dense<0.000000e+00> : vector<104x16xf32>
    %45 = tpu.matmul %43, %44, %cst_30 {dimension_numbers = #tpu.dot_dimension_numbers<[1], [0], [0], [1], [0, 0, 1, 1], [], []>} : vector<104x32xf32>, vector<32x16xf32>, vector<104x16xf32> -> vector<104x16xf32>
    %c0_31 = arith.constant 0 : index
    %c0_32 = arith.constant 0 : index
    %46 = vector.load %arg11[%c0_31, %c0_32] : memref<1x16xf32, #tpu.memory_space<vmem>>, vector<1x16xf32>
    %47 = vector.broadcast %46 : vector<1x16xf32> to vector<104x16xf32>
    %48 = arith.addf %45, %47 : vector<104x16xf32>
    %c0_33 = arith.constant 0 : index
    %c0_34 = arith.constant 0 : index
    %49 = vector.load %arg12[%c0_33, %c0_34] : memref<104x16xf32, #tpu.memory_space<vmem>>, vector<104x16xf32>
    tpu.vector_store %arg12[%c0_33, %c0_34], %48 {strides = array<i32>} : memref<104x16xf32, #tpu.memory_space<vmem>>, vector<104x16xf32>,
    return
  }
  func.func @transform_0(%arg0: i32) -> (i32, i32) {
    %c0_i32 = arith.constant 0 : i32
    %c0_i32_0 = arith.constant 0 : i32
    return %arg0, %c0_i32 : i32, i32
  }
  func.func @transform_1(%arg0: i32) -> (i32, i32) {
    %c0_i32 = arith.constant 0 : i32
    %c0_i32_0 = arith.constant 0 : i32
    %c0_i32_1 = arith.constant 0 : i32
    return %c0_i32, %c0_i32_0 : i32, i32
  }
  func.func @transform_2(%arg0: i32) -> (i32, i32) {
    %c0_i32 = arith.constant 0 : i32
    %c0_i32_0 = arith.constant 0 : i32
    %c0_i32_1 = arith.constant 0 : i32
    return %c0_i32, %c0_i32_0 : i32, i32
  }
  func.func @transform_3(%arg0: i32) -> (i32, i32) {
    %c0_i32 = arith.constant 0 : i32
    %c0_i32_0 = arith.constant 0 : i32
    %c0_i32_1 = arith.constant 0 : i32
    return %c0_i32, %c0_i32_0 : i32, i32
  }
  func.func @transform_4(%arg0: i32) -> (i32, i32) {
    %c0_i32 = arith.constant 0 : i32
    %c0_i32_0 = arith.constant 0 : i32
    %c0_i32_1 = arith.constant 0 : i32
    return %c0_i32, %c0_i32_0 : i32, i32
  }
  func.func @transform_5(%arg0: i32) -> (i32, i32) {
    %c0_i32 = arith.constant 0 : i32
    %c0_i32_0 = arith.constant 0 : i32
    %c0_i32_1 = arith.constant 0 : i32
    return %c0_i32, %c0_i32_0 : i32, i32
  }
  func.func @transform_6(%arg0: i32) -> (i32, i32) {
    %c0_i32 = arith.constant 0 : i32
    %c0_i32_0 = arith.constant 0 : i32
    %c0_i32_1 = arith.constant 0 : i32
    return %c0_i32, %c0_i32_0 : i32, i32
  }
  func.func @transform_7(%arg0: i32) -> (i32, i32) {
    %c0_i32 = arith.constant 0 : i32
    %c0_i32_0 = arith.constant 0 : i32
    %c0_i32_1 = arith.constant 0 : i32
    return %c0_i32, %c0_i32_0 : i32, i32
  }
  func.func @transform_8(%arg0: i32) -> (i32, i32) {
    %c0_i32 = arith.constant 0 : i32
    %c0_i32_0 = arith.constant 0 : i32
    %c0_i32_1 = arith.constant 0 : i32
    return %c0_i32, %c0_i32_0 : i32, i32
  }
  func.func @transform_9(%arg0: i32) -> (i32, i32) {
    %c0_i32 = arith.constant 0 : i32
    %c0_i32_0 = arith.constant 0 : i32
    %c0_i32_1 = arith.constant 0 : i32
    return %c0_i32, %c0_i32_0 : i32, i32
  }
  func.func @transform_10(%arg0: i32) -> (i32, i32) {
    %c0_i32 = arith.constant 0 : i32
    %c0_i32_0 = arith.constant 0 : i32
    %c0_i32_1 = arith.constant 0 : i32
    return %c0_i32, %c0_i32_0 : i32, i32
  }
  func.func @transform_11(%arg0: i32) -> (i32, i32) {
    %c0_i32 = arith.constant 0 : i32
    %c0_i32_0 = arith.constant 0 : i32
    return %arg0, %c0_i32 : i32, i32
  }
}

</mosaic_0001>

<llo_original>
// kernel: tpu_custom_call.1
$region0: #{tpu_custom_call.1}
  #allocation0 [shape = 'u32[]', space=smem, size = 0x4, offset = 0x4, fixed_abs, tag = 'smem constant byte address 0x4 - core index']
  #allocation1 [shape = 'u32[144,128]{1,0:T(1,128)}', space=vmem, size = 0x12000, scoped, tag = 'internal scratch']
  %s0 = inlined_call_operand.hbm [shape: f32[8,128], index: 0, kind: input, shape index: {}]
  %s1 = inlined_call_operand.hbm [shape: f32[16,128], index: 1, kind: output, shape index: {}]
  %s2 = sld [smem:[#allocation0]]
  $region41: #{tpu_custom_call.1} parent=0
    _
  %s4 = ssub.s32 1, %s2
  %s5 = scalar_select 0, %s4, %s2
  $region1: #{tpu_custom_call.1} parent=0
    #allocation2 [shape = 'u8[4096]{0}', space=vmem, size = 0x1000, scoped, tag = 'input window, operand 0, single buffered']
    #allocation3 [shape = 's32[2]{0}', space=sflag, size = 0x8, scoped, tag = 'scoped memory for tpu_custom_call.1']
    #allocation4 [shape = 's32[2]{0}', space=sflag, size = 0x8, scoped, tag = 'scoped memory for tpu_custom_call.1']
    #allocation5 [shape = 'u8[8192]{0}', space=vmem, size = 0x2000, scoped, tag = 'output window, operand 0']
    %6 = vsyncpa [#allocation3], 0
    %7 = vsyncpa [#allocation4], 0
    %s8 = scalar_lea.sflag [#allocation4], 1
    %9 = vsyncpa %s8, 0
    loop: start=0, step=1, limit=4
    $region2: #{tpu_custom_call.1} parent=1 // loop_pre_header
      _
    $region3: #{tpu_custom_call.1} parent=1 // loop_header
      %s11 = sphi 0, %s15
      %p12 = scmp.ge.s32.totalorder %s11, 4
      %s19 = sphi 0, %s19
      %s21 = sphi 0, %s19
      %s22 = sphi 0, %s21
      %s36 = sphi 0, %s22
      %s42 = sphi 0, %s44
      %s45 = sphi 0, %s42
      %s46 = sphi 0, %s45
      %s62 = sphi 0, %s46
    $region4: #{tpu_custom_call.1} parent=1 // loop_header_branch
      %14 = sbr.rel (%p12) target = $region8
    $region5: #{tpu_custom_call.1} parent=1 // loop_body
      %s16 = ssub.s32 %s11, 1
      %s17 = ssub.s32 %s11, 2
      %s18 = sadd.s32 %s11, 1
      %s20 = sadd.s32 %s19, 1
      %p23 = scmp.eq.s32.totalorder %s11, 1
      %p24 = scmp.ne.s32.totalorder %s19, %s21
      %p25 = scmp.eq.s32.totalorder %s11, 0
      %p26 = por %p24, %p25
      %p27 = scmp.ne.s32.totalorder %s19, %s21
      %p28 = scmp.eq.s32.totalorder %s16, 1
      %p29 = por %p27, %p28
      %p30 = scmp.ne.s32.totalorder %s21, %s22
      %p31 = scmp.eq.s32.totalorder %s16, 0
      %p32 = por %p30, %p31
      %p33 = scmp.ne.s32.totalorder %s21, %s22
      %p34 = scmp.eq.s32.totalorder %s17, 1
      %p35 = por %p33, %p34
      %p37 = scmp.ne.s32.totalorder %s22, %s36
      %p38 = scmp.eq.s32.totalorder %s17, 0
      %p39 = por %p37, %p38
      %s40 = ssub.s32 %s11, %s18
      %p41 = scmp.eq.s32.totalorder %s40, 0
      %s43 = sadd.s32 %s42, 1
      %s44 = scalar_select %p41, %s42, %s43
      %p47 = pneg %p41
      %p48 = scmp.eq.s32.totalorder %s11, 1
      %p49 = por %p47, %p48
      %p50 = scmp.ne.s32.totalorder %s42, %s45
      %p51 = scmp.eq.s32.totalorder %s11, 0
      %p52 = por %p50, %p51
      %p53 = scmp.ne.s32.totalorder %s42, %s45
      %p54 = scmp.eq.s32.totalorder %s16, 1
      %p55 = por %p53, %p54
      %p56 = scmp.ne.s32.totalorder %s45, %s46
      %p57 = scmp.eq.s32.totalorder %s16, 0
      %p58 = por %p56, %p57
      %p59 = scmp.ne.s32.totalorder %s45, %s46
      %p60 = scmp.eq.s32.totalorder %s17, 1
      %p61 = por %p59, %p60
      %p63 = scmp.ne.s32.totalorder %s46, %s62
      %p64 = scmp.eq.s32.totalorder %s17, 0
      %p65 = por %p63, %p64
      %p66 = scmp.le.s32.totalorder 1, %s11
      %p67 = scmp.lt.s32.totalorder %s11, 3
      %p68 = pnand %p66, %p67
      %p69 = pneg %p68
      // Predicated region
      $region9: #{tpu_custom_call.1} parent=5 // pred_check
        _
      $region10: #{tpu_custom_call.1} parent=5 // pred_check_branch
        %71 = sbr.rel (%p68) target = $region12
      $region11: #{tpu_custom_call.1} parent=5 // pred_region
        %s72 = ssub.s32 %s11, 1
        // Predicated region
        $region13: #{tpu_custom_call.1} parent=11 // pred_check
          %p73 = pneg %p32
        $region14: #{tpu_custom_call.1} parent=11 // pred_check_branch
          %75 = sbr.rel (%p73) target = $region16
        $region15: #{tpu_custom_call.1} parent=11 // pred_region
          %s77 = ssub.s32 128, 128
          %78 = vsyncadd [#allocation3], %s77
          %s80 = sshll.u32 [#allocation2], 4
          %s81 = int_to_ptr.vmem [resolvable:$true] %s80
          %83 = dma.hbm_to_vmem [thread:$0]  %s0, 128, %s81, [#allocation3]
        $region16: #{tpu_custom_call.1} parent=11 // pred_fallthru
          _
      $region12: #{tpu_custom_call.1} parent=5 // pred_fallthru
        _
      %p84 = scmp.lt.s32.totalorder %s11, 2
      // Predicated region
      $region17: #{tpu_custom_call.1} parent=5 // pred_check
        %p85 = pneg %p84
      $region18: #{tpu_custom_call.1} parent=5 // pred_check_branch
        %87 = sbr.rel (%p85) target = $region20
      $region19: #{tpu_custom_call.1} parent=5 // pred_region
        _
      $region20: #{tpu_custom_call.1} parent=5 // pred_fallthru
        _
      %p88 = scmp.le.s32.totalorder 1, %s11
      %p89 = scmp.lt.s32.totalorder %s11, 3
      %p90 = pnand %p88, %p89
      %p91 = pneg %p90
      // Predicated region
      $region21: #{tpu_custom_call.1} parent=5 // pred_check
        _
      $region22: #{tpu_custom_call.1} parent=5 // pred_check_branch
        %93 = sbr.rel (%p90) target = $region24
      $region23: #{tpu_custom_call.1} parent=5 // pred_region
        %s94 = ssub.s32 %s11, 1
        // Predicated region
        $region25: #{tpu_custom_call.1} parent=23 // pred_check
          %p95 = pneg %p32
        $region26: #{tpu_custom_call.1} parent=23 // pred_check_branch
          %97 = sbr.rel (%p95) target = $region28
        $region27: #{tpu_custom_call.1} parent=23 // pred_region
          %98 = dma.done [#allocation3], 128
        $region28: #{tpu_custom_call.1} parent=23 // pred_fallthru
          _
        %p99 = pneg %p32
        %p100 = pneg %p29
        %p101 = pneg %p58
        %p102 = pneg %p55
        %s103 = sand.u32 %s45, 1
        %s104 = scalar_lea.sflag [#allocation4], %s103
        %s105 = sand.u32 %s45, 1
        %s106 = smul.addr %s105, 8
        %s107 = scalar_lea.vmem [#allocation5], %s106
        %v108 = vld [vmem:[#allocation2] sm:$0xff]
        %109 = vst [vmem:[%s107] sm:$0xff] %v108
        %s110 = sand.u32 %s45, 1
        %s111 = scalar_lea.sflag [#allocation4], %s110
        %s112 = sand.u32 %s45, 1
        %s113 = smul.addr %s112, 8
        %s114 = scalar_lea.vmem [#allocation5], %s113
        // Predicated region
        $region29: #{tpu_custom_call.1} parent=23 // pred_check
          %p115 = pneg %p55
        $region30: #{tpu_custom_call.1} parent=23 // pred_check_branch
          %117 = sbr.rel (%p115) target = $region32
        $region31: #{tpu_custom_call.1} parent=23 // pred_region
          %s119 = ssub.s32 128, 128
          %120 = vsyncadd %s111, %s119
          %s121 = smul.addr %s16, 128
          %s122 = scalar_lea.hbm %s1, %s121
          %s124 = sshll.u32 %s114, 4
          %s125 = int_to_ptr.vmem [resolvable:$true] %s124
          %127 = dma.vmem_to_hbm [thread:$0]  %s125, 128, %s122, %s111
        $region32: #{tpu_custom_call.1} parent=23 // pred_fallthru
          _
      $region24: #{tpu_custom_call.1} parent=5 // pred_fallthru
        _
      %p128 = scmp.le.s32.totalorder 2, %s11
      // Predicated region
      $region33: #{tpu_custom_call.1} parent=5 // pred_check
        %p129 = pneg %p128
      $region34: #{tpu_custom_call.1} parent=5 // pred_check_branch
        %131 = sbr.rel (%p129) target = $region36
      $region35: #{tpu_custom_call.1} parent=5 // pred_region
        %s132 = ssub.s32 %s11, 2
        // Predicated region
        $region37: #{tpu_custom_call.1} parent=35 // pred_check
          %p133 = pneg %p61
        $region38: #{tpu_custom_call.1} parent=35 // pred_check_branch
          %135 = sbr.rel (%p133) target = $region40
        $region39: #{tpu_custom_call.1} parent=35 // pred_region
          %s136 = sand.u32 %s46, 1
          %s137 = scalar_lea.sflag [#allocation4], %s136
          %s138 = sand.u32 %s46, 1
          %s139 = smul.addr %s138, 8
          %s140 = scalar_lea.vmem [#allocation5], %s139
          %141 = dma.done %s137, 128
        $region40: #{tpu_custom_call.1} parent=35 // pred_fallthru
          _
      $region36: #{tpu_custom_call.1} parent=5 // pred_fallthru
        _
    $region6: #{tpu_custom_call.1} parent=1 // loop_footer
      %s15 = sadd.s32 1, %s11
    $region7: #{tpu_custom_call.1} parent=1 // loop_footer_branch
      %10 = sbr.rel target = $region3
    $region8: #{tpu_custom_call.1} parent=1 // loop_exit
      _
    %142 = vsyncpa [#allocation3], 1
    %s143 = scalar_lea.sflag [#allocation3], 1
    %144 = vsyncpa %s143, 1
    %145 = vsyncpa [#allocation4], 1
    %s146 = scalar_lea.sflag [#allocation4], 1
    %147 = vsyncpa %s146, 1

// kernel: tpu_custom_call.1
$region0: #{tpu_custom_call.1}
  #allocation0 [shape = 'u32[]', space=smem, size = 0x4, offset = 0x4, fixed_abs, tag = 'smem constant byte address 0x4 - core index']
  #allocation1 [shape = 'u32[144,128]{1,0:T(1,128)}', space=vmem, size = 0x12000, scoped, tag = 'internal scratch']
  %s0 = inlined_call_operand.vmem [shape: f32[208,16], index: 0, kind: input, shape index: {}]
  %s1 = inlined_call_operand.vmem [shape: f32[16,32], index: 1, kind: input, shape index: {}]
  %s2 = inlined_call_operand.vmem [shape: f32[1,32], index: 2, kind: input, shape index: {}]
  %s3 = inlined_call_operand.vmem [shape: f32[32,32], index: 3, kind: input, shape index: {}]
  %s4 = inlined_call_operand.vmem [shape: f32[1,32], index: 4, kind: input, shape index: {}]
  %s5 = inlined_call_operand.vmem [shape: f32[32,32], index: 5, kind: input, shape index: {}]
  %s6 = inlined_call_operand.vmem [shape: f32[1,32], index: 6, kind: input, shape index: {}]
  %s7 = inlined_call_operand.vmem [shape: f32[32,32], index: 7, kind: input, shape index: {}]
  %s8 = inlined_call_operand.vmem [shape: f32[1,32], index: 8, kind: input, shape index: {}]
  %s9 = inlined_call_operand.vmem [shape: f32[32,16], index: 9, kind: input, shape index: {}]
  %s10 = inlined_call_operand.vmem [shape: f32[1,16], index: 10, kind: input, shape index: {}]
  %s11 = inlined_call_operand.vmem [shape: f32[208,16], index: 11, kind: output, shape index: {}]
  %s12 = sld [smem:[#allocation0]]
  $region77: #{tpu_custom_call.1} parent=0
    _
  %s14 = ssub.s32 1, %s12
  %s15 = scalar_select 0, %s14, %s12
  loop: start=0, step=1, limit=4
  $region2: #{tpu_custom_call.1} parent=0 // loop_pre_header
    _
  $region3: #{tpu_custom_call.1} parent=0 // loop_header
    %s17 = sphi 0, %s21
    %p18 = scmp.ge.s32.totalorder %s17, 4
    %s27 = sphi 0, %s29
    %s30 = sphi 0, %s27
    %s31 = sphi 0, %s30
    %s47 = sphi 0, %s31
    %s51 = sphi 0, %s51
    %s53 = sphi 0, %s51
    %s54 = sphi 0, %s53
    %s68 = sphi 0, %s54
    %s72 = sphi 0, %s72
    %s74 = sphi 0, %s72
    %s75 = sphi 0, %s74
    %s89 = sphi 0, %s75
    %s93 = sphi 0, %s93
    %s95 = sphi 0, %s93
    %s96 = sphi 0, %s95
    %s110 = sphi 0, %s96
    %s114 = sphi 0, %s114
    %s116 = sphi 0, %s114
    %s117 = sphi 0, %s116
    %s131 = sphi 0, %s117
    %s135 = sphi 0, %s135
    %s137 = sphi 0, %s135
    %s138 = sphi 0, %s137
    %s152 = sphi 0, %s138
    %s156 = sphi 0, %s156
    %s158 = sphi 0, %s156
    %s159 = sphi 0, %s158
    %s173 = sphi 0, %s159
    %s177 = sphi 0, %s177
    %s179 = sphi 0, %s177
    %s180 = sphi 0, %s179
    %s194 = sphi 0, %s180
    %s198 = sphi 0, %s198
    %s200 = sphi 0, %s198
    %s201 = sphi 0, %s200
    %s215 = sphi 0, %s201
    %s219 = sphi 0, %s219
    %s221 = sphi 0, %s219
    %s222 = sphi 0, %s221
    %s236 = sphi 0, %s222
    %s240 = sphi 0, %s240
    %s242 = sphi 0, %s240
    %s243 = sphi 0, %s242
    %s257 = sphi 0, %s243
    %s263 = sphi 0, %s265
    %s266 = sphi 0, %s263
    %s267 = sphi 0, %s266
    %s283 = sphi 0, %s267
  $region4: #{tpu_custom_call.1} parent=0 // loop_header_branch
    %20 = sbr.rel (%p18) target = $region8
  $region5: #{tpu_custom_call.1} parent=0 // loop_body
    %s22 = ssub.s32 %s17, 1
    %s23 = ssub.s32 %s17, 2
    %s24 = sadd.s32 %s17, 1
    %s25 = ssub.s32 %s17, %s24
    %p26 = scmp.eq.s32.totalorder %s25, 0
    %s28 = sadd.s32 %s27, 1
    %s29 = scalar_select %p26, %s27, %s28
    %p32 = pneg %p26
    %p33 = scmp.eq.s32.totalorder %s17, 1
    %p34 = por %p32, %p33
    %p35 = scmp.ne.s32.totalorder %s27, %s30
    %p36 = scmp.eq.s32.totalorder %s17, 0
    %p37 = por %p35, %p36
    %p38 = scmp.ne.s32.totalorder %s27, %s30
    %p39 = scmp.eq.s32.totalorder %s22, 1
    %p40 = por %p38, %p39
    %p41 = scmp.ne.s32.totalorder %s30, %s31
    %p42 = scmp.eq.s32.totalorder %s22, 0
    %p43 = por %p41, %p42
    %p44 = scmp.ne.s32.totalorder %s30, %s31
    %p45 = scmp.eq.s32.totalorder %s23, 1
    %p46 = por %p44, %p45
    %p48 = scmp.ne.s32.totalorder %s31, %s47
    %p49 = scmp.eq.s32.totalorder %s23, 0
    %p50 = por %p48, %p49
    %s52 = sadd.s32 %s51, 1
    %p55 = scmp.eq.s32.totalorder %s17, 1
    %p56 = scmp.ne.s32.totalorder %s51, %s53
    %p57 = scmp.eq.s32.totalorder %s17, 0
    %p58 = por %p56, %p57
    %p59 = scmp.ne.s32.totalorder %s51, %s53
    %p60 = scmp.eq.s32.totalorder %s22, 1
    %p61 = por %p59, %p60
    %p62 = scmp.ne.s32.totalorder %s53, %s54
    %p63 = scmp.eq.s32.totalorder %s22, 0
    %p64 = por %p62, %p63
    %p65 = scmp.ne.s32.totalorder %s53, %s54
    %p66 = scmp.eq.s32.totalorder %s23, 1
    %p67 = por %p65, %p66
    %p69 = scmp.ne.s32.totalorder %s54, %s68
    %p70 = scmp.eq.s32.totalorder %s23, 0
    %p71 = por %p69, %p70
    %s73 = sadd.s32 %s72, 1
    %p76 = scmp.eq.s32.totalorder %s17, 1
    %p77 = scmp.ne.s32.totalorder %s72, %s74
    %p78 = scmp.eq.s32.totalorder %s17, 0
    %p79 = por %p77, %p78
    %p80 = scmp.ne.s32.totalorder %s72, %s74
    %p81 = scmp.eq.s32.totalorder %s22, 1
    %p82 = por %p80, %p81
    %p83 = scmp.ne.s32.totalorder %s74, %s75
    %p84 = scmp.eq.s32.totalorder %s22, 0
    %p85 = por %p83, %p84
    %p86 = scmp.ne.s32.totalorder %s74, %s75
    %p87 = scmp.eq.s32.totalorder %s23, 1
    %p88 = por %p86, %p87
    %p90 = scmp.ne.s32.totalorder %s75, %s89
    %p91 = scmp.eq.s32.totalorder %s23, 0
    %p92 = por %p90, %p91
    %s94 = sadd.s32 %s93, 1
    %p97 = scmp.eq.s32.totalorder %s17, 1
    %p98 = scmp.ne.s32.totalorder %s93, %s95
    %p99 = scmp.eq.s32.totalorder %s17, 0
    %p100 = por %p98, %p99
    %p101 = scmp.ne.s32.totalorder %s93, %s95
    %p102 = scmp.eq.s32.totalorder %s22, 1
    %p103 = por %p101, %p102
    %p104 = scmp.ne.s32.totalorder %s95, %s96
    %p105 = scmp.eq.s32.totalorder %s22, 0
    %p106 = por %p104, %p105
    %p107 = scmp.ne.s32.totalorder %s95, %s96
    %p108 = scmp.eq.s32.totalorder %s23, 1
    %p109 = por %p107, %p108
    %p111 = scmp.ne.s32.totalorder %s96, %s110
    %p112 = scmp.eq.s32.totalorder %s23, 0
    %p113 = por %p111, %p112
    %s115 = sadd.s32 %s114, 1
    %p118 = scmp.eq.s32.totalorder %s17, 1
    %p119 = scmp.ne.s32.totalorder %s114, %s116
    %p120 = scmp.eq.s32.totalorder %s17, 0
    %p121 = por %p119, %p120
    %p122 = scmp.ne.s32.totalorder %s114, %s116
    %p123 = scmp.eq.s32.totalorder %s22, 1
    %p124 = por %p122, %p123
    %p125 = scmp.ne.s32.totalorder %s116, %s117
    %p126 = scmp.eq.s32.totalorder %s22, 0
    %p127 = por %p125, %p126
    %p128 = scmp.ne.s32.totalorder %s116, %s117
    %p129 = scmp.eq.s32.totalorder %s23, 1
    %p130 = por %p128, %p129
    %p132 = scmp.ne.s32.totalorder %s117, %s131
    %p133 = scmp.eq.s32.totalorder %s23, 0
    %p134 = por %p132, %p133
    %s136 = sadd.s32 %s135, 1
    %p139 = scmp.eq.s32.totalorder %s17, 1
    %p140 = scmp.ne.s32.totalorder %s135, %s137
    %p141 = scmp.eq.s32.totalorder %s17, 0
    %p142 = por %p140, %p141
    %p143 = scmp.ne.s32.totalorder %s135, %s137
    %p144 = scmp.eq.s32.totalorder %s22, 1
    %p145 = por %p143, %p144
    %p146 = scmp.ne.s32.totalorder %s137, %s138
    %p147 = scmp.eq.s32.totalorder %s22, 0
    %p148 = por %p146, %p147
    %p149 = scmp.ne.s32.totalorder %s137, %s138
    %p150 = scmp.eq.s32.totalorder %s23, 1
    %p151 = por %p149, %p150
    %p153 = scmp.ne.s32.totalorder %s138, %s152
    %p154 = scmp.eq.s32.totalorder %s23, 0
    %p155 = por %p153, %p154
    %s157 = sadd.s32 %s156, 1
    %p160 = scmp.eq.s32.totalorder %s17, 1
    %p161 = scmp.ne.s32.totalorder %s156, %s158
    %p162 = scmp.eq.s32.totalorder %s17, 0
    %p163 = por %p161, %p162
    %p164 = scmp.ne.s32.totalorder %s156, %s158
    %p165 = scmp.eq.s32.totalorder %s22, 1
    %p166 = por %p164, %p165
    %p167 = scmp.ne.s32.totalorder %s158, %s159
    %p168 = scmp.eq.s32.totalorder %s22, 0
    %p169 = por %p167, %p168
    %p170 = scmp.ne.s32.totalorder %s158, %s159
    %p171 = scmp.eq.s32.totalorder %s23, 1
    %p172 = por %p170, %p171
    %p174 = scmp.ne.s32.totalorder %s159, %s173
    %p175 = scmp.eq.s32.totalorder %s23, 0
    %p176 = por %p174, %p175
    %s178 = sadd.s32 %s177, 1
    %p181 = scmp.eq.s32.totalorder %s17, 1
    %p182 = scmp.ne.s32.totalorder %s177, %s179
    %p183 = scmp.eq.s32.totalorder %s17, 0
    %p184 = por %p182, %p183
    %p185 = scmp.ne.s32.totalorder %s177, %s179
    %p186 = scmp.eq.s32.totalorder %s22, 1
    %p187 = por %p185, %p186
    %p188 = scmp.ne.s32.totalorder %s179, %s180
    %p189 = scmp.eq.s32.totalorder %s22, 0
    %p190 = por %p188, %p189
    %p191 = scmp.ne.s32.totalorder %s179, %s180
    %p192 = scmp.eq.s32.totalorder %s23, 1
    %p193 = por %p191, %p192
    %p195 = scmp.ne.s32.totalorder %s180, %s194
    %p196 = scmp.eq.s32.totalorder %s23, 0
    %p197 = por %p195, %p196
    %s199 = sadd.s32 %s198, 1
    %p202 = scmp.eq.s32.totalorder %s17, 1
    %p203 = scmp.ne.s32.totalorder %s198, %s200
    %p204 = scmp.eq.s32.totalorder %s17, 0
    %p205 = por %p203, %p204
    %p206 = scmp.ne.s32.totalorder %s198, %s200
    %p207 = scmp.eq.s32.totalorder %s22, 1
    %p208 = por %p206, %p207
    %p209 = scmp.ne.s32.totalorder %s200, %s201
    %p210 = scmp.eq.s32.totalorder %s22, 0
    %p211 = por %p209, %p210
    %p212 = scmp.ne.s32.totalorder %s200, %s201
    %p213 = scmp.eq.s32.totalorder %s23, 1
    %p214 = por %p212, %p213
    %p216 = scmp.ne.s32.totalorder %s201, %s215
    %p217 = scmp.eq.s32.totalorder %s23, 0
    %p218 = por %p216, %p217
    %s220 = sadd.s32 %s219, 1
    %p223 = scmp.eq.s32.totalorder %s17, 1
    %p224 = scmp.ne.s32.totalorder %s219, %s221
    %p225 = scmp.eq.s32.totalorder %s17, 0
    %p226 = por %p224, %p225
    %p227 = scmp.ne.s32.totalorder %s219, %s221
    %p228 = scmp.eq.s32.totalorder %s22, 1
    %p229 = por %p227, %p228
    %p230 = scmp.ne.s32.totalorder %s221, %s222
    %p231 = scmp.eq.s32.totalorder %s22, 0
    %p232 = por %p230, %p231
    %p233 = scmp.ne.s32.totalorder %s221, %s222
    %p234 = scmp.eq.s32.totalorder %s23, 1
    %p235 = por %p233, %p234
    %p237 = scmp.ne.s32.totalorder %s222, %s236
    %p238 = scmp.eq.s32.totalorder %s23, 0
    %p239 = por %p237, %p238
    %s241 = sadd.s32 %s240, 1
    %p244 = scmp.eq.s32.totalorder %s17, 1
    %p245 = scmp.ne.s32.totalorder %s240, %s242
    %p246 = scmp.eq.s32.totalorder %s17, 0
    %p247 = por %p245, %p246
    %p248 = scmp.ne.s32.totalorder %s240, %s242
    %p249 = scmp.eq.s32.totalorder %s22, 1
    %p250 = por %p248, %p249
    %p251 = scmp.ne.s32.totalorder %s242, %s243
    %p252 = scmp.eq.s32.totalorder %s22, 0
    %p253 = por %p251, %p252
    %p254 = scmp.ne.s32.totalorder %s242, %s243
    %p255 = scmp.eq.s32.totalorder %s23, 1
    %p256 = por %p254, %p255
    %p258 = scmp.ne.s32.totalorder %s243, %s257
    %p259 = scmp.eq.s32.totalorder %s23, 0
    %p260 = por %p258, %p259
    %s261 = ssub.s32 %s17, %s24
    %p262 = scmp.eq.s32.totalorder %s261, 0
    %s264 = sadd.s32 %s263, 1
    %s265 = scalar_select %p262, %s263, %s264
    %p268 = pneg %p262
    %p269 = scmp.eq.s32.totalorder %s17, 1
    %p270 = por %p268, %p269
    %p271 = scmp.ne.s32.totalorder %s263, %s266
    %p272 = scmp.eq.s32.totalorder %s17, 0
    %p273 = por %p271, %p272
    %p274 = scmp.ne.s32.totalorder %s263, %s266
    %p275 = scmp.eq.s32.totalorder %s22, 1
    %p276 = por %p274, %p275
    %p277 = scmp.ne.s32.totalorder %s266, %s267
    %p278 = scmp.eq.s32.totalorder %s22, 0
    %p279 = por %p277, %p278
    %p280 = scmp.ne.s32.totalorder %s266, %s267
    %p281 = scmp.eq.s32.totalorder %s23, 1
    %p282 = por %p280, %p281
    %p284 = scmp.ne.s32.totalorder %s267, %s283
    %p285 = scmp.eq.s32.totalorder %s23, 0
    %p286 = por %p284, %p285
    %p287 = scmp.le.s32.totalorder 1, %s17
    %p288 = scmp.lt.s32.totalorder %s17, 3
    %p289 = pnand %p287, %p288
    %p290 = pneg %p289
    // Predicated region
    $region9: #{tpu_custom_call.1} parent=5 // pred_check
      _
    $region10: #{tpu_custom_call.1} parent=5 // pred_check_branch
      %292 = sbr.rel (%p289) target = $region12
    $region11: #{tpu_custom_call.1} parent=5 // pred_region
      %s293 = ssub.s32 %s17, 1
      // Predicated region
      $region13: #{tpu_custom_call.1} parent=11 // pred_check
        %p294 = pneg %p64
      $region14: #{tpu_custom_call.1} parent=11 // pred_check_branch
        %296 = sbr.rel (%p294) target = $region16
      $region15: #{tpu_custom_call.1} parent=11 // pred_region
        _
      $region16: #{tpu_custom_call.1} parent=11 // pred_fallthru
        _
      // Predicated region
      $region17: #{tpu_custom_call.1} parent=11 // pred_check
        %p297 = pneg %p85
      $region18: #{tpu_custom_call.1} parent=11 // pred_check_branch
        %299 = sbr.rel (%p297) target = $region20
      $region19: #{tpu_custom_call.1} parent=11 // pred_region
        _
      $region20: #{tpu_custom_call.1} parent=11 // pred_fallthru
        _
      // Predicated region
      $region21: #{tpu_custom_call.1} parent=11 // pred_check
        %p300 = pneg %p106
      $region22: #{tpu_custom_call.1} parent=11 // pred_check_branch
        %302 = sbr.rel (%p300) target = $region24
      $region23: #{tpu_custom_call.1} parent=11 // pred_region
        _
      $region24: #{tpu_custom_call.1} parent=11 // pred_fallthru
        _
      // Predicated region
      $region25: #{tpu_custom_call.1} parent=11 // pred_check
        %p303 = pneg %p127
      $region26: #{tpu_custom_call.1} parent=11 // pred_check_branch
        %305 = sbr.rel (%p303) target = $region28
      $region27: #{tpu_custom_call.1} parent=11 // pred_region
        _
      $region28: #{tpu_custom_call.1} parent=11 // pred_fallthru
        _
      // Predicated region
      $region29: #{tpu_custom_call.1} parent=11 // pred_check
        %p306 = pneg %p148
      $region30: #{tpu_custom_call.1} parent=11 // pred_check_branch
        %308 = sbr.rel (%p306) target = $region32
      $region31: #{tpu_custom_call.1} parent=11 // pred_region
        _
      $region32: #{tpu_custom_call.1} parent=11 // pred_fallthru
        _
      // Predicated region
      $region33: #{tpu_custom_call.1} parent=11 // pred_check
        %p309 = pneg %p169
      $region34: #{tpu_custom_call.1} parent=11 // pred_check_branch
        %311 = sbr.rel (%p309) target = $region36
      $region35: #{tpu_custom_call.1} parent=11 // pred_region
        _
      $region36: #{tpu_custom_call.1} parent=11 // pred_fallthru
        _
      // Predicated region
      $region37: #{tpu_custom_call.1} parent=11 // pred_check
        %p312 = pneg %p190
      $region38: #{tpu_custom_call.1} parent=11 // pred_check_branch
        %314 = sbr.rel (%p312) target = $region40
      $region39: #{tpu_custom_call.1} parent=11 // pred_region
        _
      $region40: #{tpu_custom_call.1} parent=11 // pred_fallthru
        _
      // Predicated region
      $region41: #{tpu_custom_call.1} parent=11 // pred_check
        %p315 = pneg %p211
      $region42: #{tpu_custom_call.1} parent=11 // pred_check_branch
        %317 = sbr.rel (%p315) target = $region44
      $region43: #{tpu_custom_call.1} parent=11 // pred_region
        _
      $region44: #{tpu_custom_call.1} parent=11 // pred_fallthru
        _
      // Predicated region
      $region45: #{tpu_custom_call.1} parent=11 // pred_check
        %p318 = pneg %p232
      $region46: #{tpu_custom_call.1} parent=11 // pred_check_branch
        %320 = sbr.rel (%p318) target = $region48
      $region47: #{tpu_custom_call.1} parent=11 // pred_region
        _
      $region48: #{tpu_custom_call.1} parent=11 // pred_fallthru
        _
      // Predicated region
      $region49: #{tpu_custom_call.1} parent=11 // pred_check
        %p321 = pneg %p253
      $region50: #{tpu_custom_call.1} parent=11 // pred_check_branch
        %323 = sbr.rel (%p321) target = $region52
      $region51: #{tpu_custom_call.1} parent=11 // pred_region
        _
      $region52: #{tpu_custom_call.1} parent=11 // pred_fallthru
        _
    $region12: #{tpu_custom_call.1} parent=5 // pred_fallthru
      _
    %p324 = scmp.lt.s32.totalorder %s17, 2
    // Predicated region
    $region53: #{tpu_custom_call.1} parent=5 // pred_check
      %p325 = pneg %p324
    $region54: #{tpu_custom_call.1} parent=5 // pred_check_branch
      %327 = sbr.rel (%p325) target = $region56
    $region55: #{tpu_custom_call.1} parent=5 // pred_region
      // Predicated region
      $region57: #{tpu_custom_call.1} parent=55 // pred_check
        %p328 = pneg %p37
      $region58: #{tpu_custom_call.1} parent=55 // pred_check_branch
        %330 = sbr.rel (%p328) target = $region60
      $region59: #{tpu_custom_call.1} parent=55 // pred_region
        %s331 = smul.u32 13, %s17
        %p332 = scmp.lt.s32.totalorder %s331, 25
        %s333 = scalar_select %p332, %s331, 25
        %s334 = smul.addr %s333, 8
        %s335 = scalar_lea.vmem %s0, %s334
        %s336 = smul.u32 13, %s17
      $region60: #{tpu_custom_call.1} parent=55 // pred_fallthru
        _
    $region56: #{tpu_custom_call.1} parent=5 // pred_fallthru
      _
    %p337 = scmp.le.s32.totalorder 1, %s17
    %p338 = scmp.lt.s32.totalorder %s17, 3
    %p339 = pnand %p337, %p338
    %p340 = pneg %p339
    // Predicated region
    $region61: #{tpu_custom_call.1} parent=5 // pred_check
      _
    $region62: #{tpu_custom_call.1} parent=5 // pred_check_branch
      %342 = sbr.rel (%p339) target = $region64
    $region63: #{tpu_custom_call.1} parent=5 // pred_region
      %s343 = ssub.s32 %s17, 1
      %s344 = smul.u32 13, %s22
      %p345 = scmp.lt.s32.totalorder %s344, 25
      %s346 = scalar_select %p345, %s344, 25
      %s347 = smul.addr %s346, 8
      %s348 = scalar_lea.vmem %s0, %s347
      %p349 = pneg %p43
      %p350 = pneg %p40
      %p351 = pneg %p64
      %p352 = pneg %p61
      %p353 = pneg %p85
      %p354 = pneg %p82
      %p355 = pneg %p106
      %p356 = pneg %p103
      %p357 = pneg %p127
      %p358 = pneg %p124
      %p359 = pneg %p148
      %p360 = pneg %p145
      %p361 = pneg %p169
      %p362 = pneg %p166
      %p363 = pneg %p190
      %p364 = pneg %p187
      %p365 = pneg %p211
      %p366 = pneg %p208
      %p367 = pneg %p232
      %p368 = pneg %p229
      %p369 = pneg %p253
      %p370 = pneg %p250
      %p371 = pneg %p279
      %p372 = pneg %p276
      %s373 = smul.u32 13, %s22
      %p374 = scmp.lt.s32.totalorder %s373, 25
      %s375 = scalar_select %p374, %s373, 25
      %s376 = smul.addr %s375, 8
      %s377 = scalar_lea.vmem %s11, %s376
      %s378 = smul.u32 13, %s22
      %p379 = scmp.lt.s32.totalorder %s378, 25
      %s380 = scalar_select %p379, %s378, 25
      %s381 = smul.addr %s380, 8
      %s382 = scalar_lea.vmem %s0, %s381
      %s383 = smul.u32 13, %s22
      %s384 = smul.u32 13, %s22
      %p385 = scmp.lt.s32.totalorder %s384, 25
      %s386 = scalar_select %p385, %s384, 25
      %s387 = smul.addr %s386, 8
      %s388 = scalar_lea.vmem %s11, %s387
      %s389 = smul.u32 13, %s22
      %v390 = vld [vmem:[%s382] sm:$0xff]
      %v391 = vld [vmem:[%s382 + $0x8] sm:$0xff]
      %v392 = vld [vmem:[%s382 + $0x10] sm:$0xff]
      %v393 = vld [vmem:[%s382 + $0x18] sm:$0xff]
      %v394 = vld [vmem:[%s382 + $0x20] sm:$0xff]
      %v395 = vld [vmem:[%s382 + $0x28] sm:$0xff]
      %v396 = vld [vmem:[%s382 + $0x30] sm:$0xff]
      %v397 = vld [vmem:[%s382 + $0x38] sm:$0xff]
      %v398 = vld [vmem:[%s382 + $0x40] sm:$0xff]
      %v399 = vld [vmem:[%s382 + $0x48] sm:$0xff]
      %v400 = vld [vmem:[%s382 + $0x50] sm:$0xff]
      %v401 = vld [vmem:[%s382 + $0x58] sm:$0xff]
      %v402 = vld [vmem:[%s382 + $0x60] sm:$0xff]
      %v403 = vld [vmem:[%s1] sm:$0xff]
      %v404 = vld [vmem:[%s1 + $0x8] sm:$0xff]
      %v405 = vld [vmem:[%s2] sm:$0x1]
      %v407 = vlaneseq
      %v408 = vshrl.u32 %v407, 7
      %v409 = vsub.s32 0, %v408
      %v410 = vrot.slane %v405, %v409
      %vm412 = vcmask 130048
      %v414 = vsel %vm412, %v390, 0
      %v417 = vsel %vm412, %v391, 0
      %v420 = vsel %vm412, %v392, 0
      %v423 = vsel %vm412, %v393, 0
      %v426 = vsel %vm412, %v394, 0
      %v429 = vsel %vm412, %v395, 0
      %v432 = vsel %vm412, %v396, 0
      %v435 = vsel %vm412, %v397, 0
      %v438 = vsel %vm412, %v398, 0
      %v441 = vsel %vm412, %v399, 0
      %v444 = vsel %vm412, %v400, 0
      %v447 = vsel %vm412, %v401, 0
      %v450 = vsel %vm412, %v402, 0
      %452 = vmatprep.subr.mxu0 0.0
      %453 = vmatpush1.msra.mxu0 0.0
      %454 = vmatprep.subr.mxu0 0.0
      %455 = vmatpush1.msra.mxu0 0.0
      %456 = vmatprep.subr.mxu0 0.0
      %457 = vmatpush1.msra.mxu0 0.0
      %458 = vmatprep.subr.mxu0 0.0
      %459 = vmatpush1.msra.mxu0 0.0
      %460 = vmatprep.subr.mxu0 0.0
      %461 = vmatpush1.msra.mxu0 0.0
      %462 = vmatprep.subr.mxu0 0.0
      %463 = vmatpush1.msra.mxu0 0.0
      %464 = vmatprep.subr.mxu0 0.0
      %465 = vmatpush1.msra.mxu0 0.0
      %466 = vmatprep.subr.mxu0 0.0
      %467 = vmatpush1.msra.mxu0 0.0
      %468 = vmatprep.subr.mxu0 0.0
      %469 = vmatpush1.msra.mxu0 0.0
      %470 = vmatprep.subr.mxu0 0.0
      %471 = vmatpush1.msra.mxu0 0.0
      %472 = vmatprep.subr.mxu0 0.0
      %473 = vmatpush1.msra.mxu0 0.0
      %474 = vmatprep.subr.mxu0 0.0
      %475 = vmatpush1.msra.mxu0 0.0
      %476 = vmatprep.subr.mxu0 0.0
      %477 = vmatpush1.msra.mxu0 0.0
      %478 = vmatprep.subr.mxu0 0.0
      %479 = vmatpush1.msra.mxu0 0.0
      %480 = vmatprep.subr.mxu0 0.0
      %481 = vmatpush1.msra.mxu0 %v404
      %482 = vmatprep.subr.mxu0 0.0
      %483 = vmatpush1.msra.mxu0 %v403
      %484 = vmatprep.subr.mxu0 0.0
      %485 = vmatpush2.msra.mxu0 0.0
      %486 = vmatprep.subr.mxu0 0.0
      %487 = vmatpush2.msra.mxu0 0.0
      %488 = vmatprep.subr.mxu0 0.0
      %489 = vmatpush2.msra.mxu0 0.0
      %490 = vmatprep.subr.mxu0 0.0
      %491 = vmatpush2.msra.mxu0 0.0
      %492 = vmatprep.subr.mxu0 0.0
      %493 = vmatpush2.msra.mxu0 0.0
      %494 = vmatprep.subr.mxu0 0.0
      %495 = vmatpush2.msra.mxu0 0.0
      %496 = vmatprep.subr.mxu0 0.0
      %497 = vmatpush2.msra.mxu0 0.0
      %498 = vmatprep.subr.mxu0 0.0
      %499 = vmatpush2.msra.mxu0 0.0
      %500 = vmatprep.subr.mxu0 0.0
      %501 = vmatpush2.msra.mxu0 0.0
      %502 = vmatprep.subr.mxu0 0.0
      %503 = vmatpush2.msra.mxu0 0.0
      %504 = vmatprep.subr.mxu0 0.0
      %505 = vmatpush2.msra.mxu0 0.0
      %506 = vmatprep.subr.mxu0 0.0
      %507 = vmatpush2.msra.mxu0 0.0
      %508 = vmatprep.subr.mxu0 0.0
      %509 = vmatpush2.msra.mxu0 0.0
      %510 = vmatprep.subr.mxu0 0.0
      %511 = vmatpush2.msra.mxu0 0.0
      %512 = vmatprep.subr.mxu0 0.0
      %513 = vmatpush2.msra.mxu0 0.0
      %514 = vmatprep.subr.mxu0 0.0
      %515 = vmatpush2.msra.mxu0 0.0
      %516 = vmatprep.mubr.f32.mxu0 0.0
      %517 = vmatmul.mubr.f32.gmra.mxu0 %v414
      %v518 = vpop.f32.mrf.mxu0
      %v519 = vadd.f32 %v410, %v518
      %v520 = vpop.f32.mrf.mxu0
      %521 = vmatprep.mubr.f32.mxu0 0.0
      %522 = vmatmul.mubr.f32.gmra.mxu0 %v417
      %v523 = vpop.f32.mrf.mxu0
      %v524 = vadd.f32 %v410, %v523
      %v525 = vpop.f32.mrf.mxu0
      %526 = vmatprep.mubr.f32.mxu0 0.0
      %527 = vmatmul.mubr.f32.gmra.mxu0 %v420
      %v528 = vpop.f32.mrf.mxu0
      %v529 = vadd.f32 %v410, %v528
      %v530 = vpop.f32.mrf.mxu0
      %531 = vmatprep.mubr.f32.mxu0 0.0
      %532 = vmatmul.mubr.f32.gmra.mxu0 %v423
      %v533 = vpop.f32.mrf.mxu0
      %v534 = vadd.f32 %v410, %v533
      %v535 = vpop.f32.mrf.mxu0
      %536 = vmatprep.mubr.f32.mxu0 0.0
      %537 = vmatmul.mubr.f32.gmra.mxu0 %v426
      %v538 = vpop.f32.mrf.mxu0
      %v539 = vadd.f32 %v410, %v538
      %v540 = vpop.f32.mrf.mxu0
      %541 = vmatprep.mubr.f32.mxu0 0.0
      %542 = vmatmul.mubr.f32.gmra.mxu0 %v429
      %v543 = vpop.f32.mrf.mxu0
      %v544 = vadd.f32 %v410, %v543
      %v545 = vpop.f32.mrf.mxu0
      %546 = vmatprep.mubr.f32.mxu0 0.0
      %547 = vmatmul.mubr.f32.gmra.mxu0 %v432
      %v548 = vpop.f32.mrf.mxu0
      %v549 = vadd.f32 %v410, %v548
      %v550 = vpop.f32.mrf.mxu0
      %551 = vmatprep.mubr.f32.mxu0 0.0
      %552 = vmatmul.mubr.f32.gmra.mxu0 %v435
      %v553 = vpop.f32.mrf.mxu0
      %v554 = vadd.f32 %v410, %v553
      %v555 = vpop.f32.mrf.mxu0
      %556 = vmatprep.mubr.f32.mxu0 0.0
      %557 = vmatmul.mubr.f32.gmra.mxu0 %v438
      %v558 = vpop.f32.mrf.mxu0
      %v559 = vadd.f32 %v410, %v558
      %v560 = vpop.f32.mrf.mxu0
      %561 = vmatprep.mubr.f32.mxu0 0.0
      %562 = vmatmul.mubr.f32.gmra.mxu0 %v441
      %v563 = vpop.f32.mrf.mxu0
      %v564 = vadd.f32 %v410, %v563
      %v565 = vpop.f32.mrf.mxu0
      %566 = vmatprep.mubr.f32.mxu0 0.0
      %567 = vmatmul.mubr.f32.gmra.mxu0 %v444
      %v568 = vpop.f32.mrf.mxu0
      %v569 = vadd.f32 %v410, %v568
      %v570 = vpop.f32.mrf.mxu0
      %571 = vmatprep.mubr.f32.mxu0 0.0
      %572 = vmatmul.mubr.f32.gmra.mxu0 %v447
      %v573 = vpop.f32.mrf.mxu0
      %v574 = vadd.f32 %v410, %v573
      %v575 = vpop.f32.mrf.mxu0
      %576 = vmatprep.mubr.f32.mxu0 0.0
      %577 = vmatmul.mubr.f32.gmra.mxu0 %v450
      %v578 = vpop.f32.mrf.mxu0
      %v579 = vadd.f32 %v410, %v578
      %v580 = vpop.f32.mrf.mxu0
      %581 = vdwg.mxu0
      %vm582 = vcmp.gt.f32.partialorder %v519, 0.0
      %vm583 = vcmp.gt.f32.partialorder %v524, 0.0
      %vm584 = vcmp.gt.f32.partialorder %v529, 0.0
      %vm585 = vcmp.gt.f32.partialorder %v534, 0.0
      %vm586 = vcmp.gt.f32.partialorder %v539, 0.0
      %vm587 = vcmp.gt.f32.partialorder %v544, 0.0
      %vm588 = vcmp.gt.f32.partialorder %v549, 0.0
      %vm589 = vcmp.gt.f32.partialorder %v554, 0.0
      %vm590 = vcmp.gt.f32.partialorder %v559, 0.0
      %vm591 = vcmp.gt.f32.partialorder %v564, 0.0
      %vm592 = vcmp.gt.f32.partialorder %v569, 0.0
      %vm593 = vcmp.gt.f32.partialorder %v574, 0.0
      %vm594 = vcmp.gt.f32.partialorder %v579, 0.0
      %v595 = vmul.f32 %v519, 0.2
      %v596 = vmul.f32 %v524, 0.2
      %v597 = vmul.f32 %v529, 0.2
      %v598 = vmul.f32 %v534, 0.2
      %v599 = vmul.f32 %v539, 0.2
      %v600 = vmul.f32 %v544, 0.2
      %v601 = vmul.f32 %v549, 0.2
      %v602 = vmul.f32 %v554, 0.2
      %v603 = vmul.f32 %v559, 0.2
      %v604 = vmul.f32 %v564, 0.2
      %v605 = vmul.f32 %v569, 0.2
      %v606 = vmul.f32 %v574, 0.2
      %v607 = vmul.f32 %v579, 0.2
      %v608 = vsel %vm582, %v519, %v595
      %v609 = vsel %vm583, %v524, %v596
      %v610 = vsel %vm584, %v529, %v597
      %v611 = vsel %vm585, %v534, %v598
      %v612 = vsel %vm586, %v539, %v599
      %v613 = vsel %vm587, %v544, %v600
      %v614 = vsel %vm588, %v549, %v601
      %v615 = vsel %vm589, %v554, %v602
      %v616 = vsel %vm590, %v559, %v603
      %v617 = vsel %vm591, %v564, %v604
      %v618 = vsel %vm592, %v569, %v605
      %v619 = vsel %vm593, %v574, %v606
      %v620 = vsel %vm594, %v579, %v607
      %v621 = vld [vmem:[%s3] sm:$0xff]
      %v622 = vld [vmem:[%s3 + $0x8] sm:$0xff]
      %v623 = vld [vmem:[%s3 + $0x10] sm:$0xff]
      %v624 = vld [vmem:[%s3 + $0x18] sm:$0xff]
      %v625 = vld [vmem:[%s4] sm:$0x1]
      %v627 = vlaneseq
      %v628 = vshrl.u32 %v627, 7
      %v629 = vsub.s32 0, %v628
      %v630 = vrot.slane %v625, %v629
      %vm632 = vcmask 261120
      %v634 = vsel %vm632, %v608, 0
      %v637 = vsel %vm632, %v609, 0
      %v640 = vsel %vm632, %v610, 0
      %v643 = vsel %vm632, %v611, 0
      %v646 = vsel %vm632, %v612, 0
      %v649 = vsel %vm632, %v613, 0
      %v652 = vsel %vm632, %v614, 0
      %v655 = vsel %vm632, %v615, 0
      %v658 = vsel %vm632, %v616, 0
      %v661 = vsel %vm632, %v617, 0
      %v664 = vsel %vm632, %v618, 0
      %v667 = vsel %vm632, %v619, 0
      %v670 = vsel %vm632, %v620, 0
      %672 = vmatprep.subr.mxu0 0.0
      %673 = vmatpush1.msra.mxu0 0.0
      %674 = vmatprep.subr.mxu0 0.0
      %675 = vmatpush1.msra.mxu0 0.0
      %676 = vmatprep.subr.mxu0 0.0
      %677 = vmatpush1.msra.mxu0 0.0
      %678 = vmatprep.subr.mxu0 0.0
      %679 = vmatpush1.msra.mxu0 0.0
      %680 = vmatprep.subr.mxu0 0.0
      %681 = vmatpush1.msra.mxu0 0.0
      %682 = vmatprep.subr.mxu0 0.0
      %683 = vmatpush1.msra.mxu0 0.0
      %684 = vmatprep.subr.mxu0 0.0
      %685 = vmatpush1.msra.mxu0 0.0
      %686 = vmatprep.subr.mxu0 0.0
      %687 = vmatpush1.msra.mxu0 0.0
      %688 = vmatprep.subr.mxu0 0.0
      %689 = vmatpush1.msra.mxu0 0.0
      %690 = vmatprep.subr.mxu0 0.0
      %691 = vmatpush1.msra.mxu0 0.0
      %692 = vmatprep.subr.mxu0 0.0
      %693 = vmatpush1.msra.mxu0 0.0
      %694 = vmatprep.subr.mxu0 0.0
      %695 = vmatpush1.msra.mxu0 0.0
      %696 = vmatprep.subr.mxu0 0.0
      %697 = vmatpush1.msra.mxu0 %v624
      %698 = vmatprep.subr.mxu0 0.0
      %699 = vmatpush1.msra.mxu0 %v623
      %700 = vmatprep.subr.mxu0 0.0
      %701 = vmatpush1.msra.mxu0 %v622
      %702 = vmatprep.subr.mxu0 0.0
      %703 = vmatpush1.msra.mxu0 %v621
      %704 = vmatprep.subr.mxu0 0.0
      %705 = vmatpush2.msra.mxu0 0.0
      %706 = vmatprep.subr.mxu0 0.0
      %707 = vmatpush2.msra.mxu0 0.0
      %708 = vmatprep.subr.mxu0 0.0
      %709 = vmatpush2.msra.mxu0 0.0
      %710 = vmatprep.subr.mxu0 0.0
      %711 = vmatpush2.msra.mxu0 0.0
      %712 = vmatprep.subr.mxu0 0.0
      %713 = vmatpush2.msra.mxu0 0.0
      %714 = vmatprep.subr.mxu0 0.0
      %715 = vmatpush2.msra.mxu0 0.0
      %716 = vmatprep.subr.mxu0 0.0
      %717 = vmatpush2.msra.mxu0 0.0
      %718 = vmatprep.subr.mxu0 0.0
      %719 = vmatpush2.msra.mxu0 0.0
      %720 = vmatprep.subr.mxu0 0.0
      %721 = vmatpush2.msra.mxu0 0.0
      %722 = vmatprep.subr.mxu0 0.0
      %723 = vmatpush2.msra.mxu0 0.0
      %724 = vmatprep.subr.mxu0 0.0
      %725 = vmatpush2.msra.mxu0 0.0
      %726 = vmatprep.subr.mxu0 0.0
      %727 = vmatpush2.msra.mxu0 0.0
      %728 = vmatprep.subr.mxu0 0.0
      %729 = vmatpush2.msra.mxu0 0.0
      %730 = vmatprep.subr.mxu0 0.0
      %731 = vmatpush2.msra.mxu0 0.0
      %732 = vmatprep.subr.mxu0 0.0
      %733 = vmatpush2.msra.mxu0 0.0
      %734 = vmatprep.subr.mxu0 0.0
      %735 = vmatpush2.msra.mxu0 0.0
      %736 = vmatprep.mubr.f32.mxu0 0.0
      %737 = vmatmul.mubr.f32.gmra.mxu0 %v634
      %v738 = vpop.f32.mrf.mxu0
      %v739 = vadd.f32 %v630, %v738
      %v740 = vpop.f32.mrf.mxu0
      %741 = vmatprep.mubr.f32.mxu0 0.0
      %742 = vmatmul.mubr.f32.gmra.mxu0 %v637
      %v743 = vpop.f32.mrf.mxu0
      %v744 = vadd.f32 %v630, %v743
      %v745 = vpop.f32.mrf.mxu0
      %746 = vmatprep.mubr.f32.mxu0 0.0
      %747 = vmatmul.mubr.f32.gmra.mxu0 %v640
      %v748 = vpop.f32.mrf.mxu0
      %v749 = vadd.f32 %v630, %v748
      %v750 = vpop.f32.mrf.mxu0
      %751 = vmatprep.mubr.f32.mxu0 0.0
      %752 = vmatmul.mubr.f32.gmra.mxu0 %v643
      %v753 = vpop.f32.mrf.mxu0
      %v754 = vadd.f32 %v630, %v753
      %v755 = vpop.f32.mrf.mxu0
      %756 = vmatprep.mubr.f32.mxu0 0.0
      %757 = vmatmul.mubr.f32.gmra.mxu0 %v646
      %v758 = vpop.f32.mrf.mxu0
      %v759 = vadd.f32 %v630, %v758
      %v760 = vpop.f32.mrf.mxu0
      %761 = vmatprep.mubr.f32.mxu0 0.0
      %762 = vmatmul.mubr.f32.gmra.mxu0 %v649
      %v763 = vpop.f32.mrf.mxu0
      %v764 = vadd.f32 %v630, %v763
      %v765 = vpop.f32.mrf.mxu0
      %766 = vmatprep.mubr.f32.mxu0 0.0
      %767 = vmatmul.mubr.f32.gmra.mxu0 %v652
      %v768 = vpop.f32.mrf.mxu0
      %v769 = vadd.f32 %v630, %v768
      %v770 = vpop.f32.mrf.mxu0
      %771 = vmatprep.mubr.f32.mxu0 0.0
      %772 = vmatmul.mubr.f32.gmra.mxu0 %v655
      %v773 = vpop.f32.mrf.mxu0
      %v774 = vadd.f32 %v630, %v773
      %v775 = vpop.f32.mrf.mxu0
      %776 = vmatprep.mubr.f32.mxu0 0.0
      %777 = vmatmul.mubr.f32.gmra.mxu0 %v658
      %v778 = vpop.f32.mrf.mxu0
      %v779 = vadd.f32 %v630, %v778
      %v780 = vpop.f32.mrf.mxu0
      %781 = vmatprep.mubr.f32.mxu0 0.0
      %782 = vmatmul.mubr.f32.gmra.mxu0 %v661
      %v783 = vpop.f32.mrf.mxu0
      %v784 = vadd.f32 %v630, %v783
      %v785 = vpop.f32.mrf.mxu0
      %786 = vmatprep.mubr.f32.mxu0 0.0
      %787 = vmatmul.mubr.f32.gmra.mxu0 %v664
      %v788 = vpop.f32.mrf.mxu0
      %v789 = vadd.f32 %v630, %v788
      %v790 = vpop.f32.mrf.mxu0
      %791 = vmatprep.mubr.f32.mxu0 0.0
      %792 = vmatmul.mubr.f32.gmra.mxu0 %v667
      %v793 = vpop.f32.mrf.mxu0
      %v794 = vadd.f32 %v630, %v793
      %v795 = vpop.f32.mrf.mxu0
      %796 = vmatprep.mubr.f32.mxu0 0.0
      %797 = vmatmul.mubr.f32.gmra.mxu0 %v670
      %v798 = vpop.f32.mrf.mxu0
      %v799 = vadd.f32 %v630, %v798
      %v800 = vpop.f32.mrf.mxu0
      %801 = vdwg.mxu0
      %vm802 = vcmp.gt.f32.partialorder %v739, 0.0
      %vm803 = vcmp.gt.f32.partialorder %v744, 0.0
      %vm804 = vcmp.gt.f32.partialorder %v749, 0.0
      %vm805 = vcmp.gt.f32.partialorder %v754, 0.0
      %vm806 = vcmp.gt.f32.partialorder %v759, 0.0
      %vm807 = vcmp.gt.f32.partialorder %v764, 0.0
      %vm808 = vcmp.gt.f32.partialorder %v769, 0.0
      %vm809 = vcmp.gt.f32.partialorder %v774, 0.0
      %vm810 = vcmp.gt.f32.partialorder %v779, 0.0
      %vm811 = vcmp.gt.f32.partialorder %v784, 0.0
      %vm812 = vcmp.gt.f32.partialorder %v789, 0.0
      %vm813 = vcmp.gt.f32.partialorder %v794, 0.0
      %vm814 = vcmp.gt.f32.partialorder %v799, 0.0
      %v815 = vmul.f32 %v739, 0.2
      %v816 = vmul.f32 %v744, 0.2
      %v817 = vmul.f32 %v749, 0.2
      %v818 = vmul.f32 %v754, 0.2
      %v819 = vmul.f32 %v759, 0.2
      %v820 = vmul.f32 %v764, 0.2
      %v821 = vmul.f32 %v769, 0.2
      %v822 = vmul.f32 %v774, 0.2
      %v823 = vmul.f32 %v779, 0.2
      %v824 = vmul.f32 %v784, 0.2
      %v825 = vmul.f32 %v789, 0.2
      %v826 = vmul.f32 %v794, 0.2
      %v827 = vmul.f32 %v799, 0.2
      %v828 = vsel %vm802, %v739, %v815
      %v829 = vsel %vm803, %v744, %v816
      %v830 = vsel %vm804, %v749, %v817
      %v831 = vsel %vm805, %v754, %v818
      %v832 = vsel %vm806, %v759, %v819
      %v833 = vsel %vm807, %v764, %v820
      %v834 = vsel %vm808, %v769, %v821
      %v835 = vsel %vm809, %v774, %v822
      %v836 = vsel %vm810, %v779, %v823
      %v837 = vsel %vm811, %v784, %v824
      %v838 = vsel %vm812, %v789, %v825
      %v839 = vsel %vm813, %v794, %v826
      %v840 = vsel %vm814, %v799, %v827
      %v841 = vadd.f32 %v828, %v608
      %v842 = vadd.f32 %v829, %v609
      %v843 = vadd.f32 %v830, %v610
      %v844 = vadd.f32 %v831, %v611
      %v845 = vadd.f32 %v832, %v612
      %v846 = vadd.f32 %v833, %v613
      %v847 = vadd.f32 %v834, %v614
      %v848 = vadd.f32 %v835, %v615
      %v849 = vadd.f32 %v836, %v616
      %v850 = vadd.f32 %v837, %v617
      %v851 = vadd.f32 %v838, %v618
      %v852 = vadd.f32 %v839, %v619
      %v853 = vadd.f32 %v840, %v620
      %v854 = vld [vmem:[%s5] sm:$0xff]
      %v855 = vld [vmem:[%s5 + $0x8] sm:$0xff]
      %v856 = vld [vmem:[%s5 + $0x10] sm:$0xff]
      %v857 = vld [vmem:[%s5 + $0x18] sm:$0xff]
      %v858 = vld [vmem:[%s6] sm:$0x1]
      %v860 = vlaneseq
      %v861 = vshrl.u32 %v860, 7
      %v862 = vsub.s32 0, %v861
      %v863 = vrot.slane %v858, %v862
      %v866 = vsel %vm632, %v841, 0
      %v869 = vsel %vm632, %v842, 0
      %v872 = vsel %vm632, %v843, 0
      %v875 = vsel %vm632, %v844, 0
      %v878 = vsel %vm632, %v845, 0
      %v881 = vsel %vm632, %v846, 0
      %v884 = vsel %vm632, %v847, 0
      %v887 = vsel %vm632, %v848, 0
      %v890 = vsel %vm632, %v849, 0
      %v893 = vsel %vm632, %v850, 0
      %v896 = vsel %vm632, %v851, 0
      %v899 = vsel %vm632, %v852, 0
      %v902 = vsel %vm632, %v853, 0
      %904 = vmatprep.subr.mxu0 0.0
      %905 = vmatpush1.msra.mxu0 0.0
      %906 = vmatprep.subr.mxu0 0.0
      %907 = vmatpush1.msra.mxu0 0.0
      %908 = vmatprep.subr.mxu0 0.0
      %909 = vmatpush1.msra.mxu0 0.0
      %910 = vmatprep.subr.mxu0 0.0
      %911 = vmatpush1.msra.mxu0 0.0
      %912 = vmatprep.subr.mxu0 0.0
      %913 = vmatpush1.msra.mxu0 0.0
      %914 = vmatprep.subr.mxu0 0.0
      %915 = vmatpush1.msra.mxu0 0.0
      %916 = vmatprep.subr.mxu0 0.0
      %917 = vmatpush1.msra.mxu0 0.0
      %918 = vmatprep.subr.mxu0 0.0
      %919 = vmatpush1.msra.mxu0 0.0
      %920 = vmatprep.subr.mxu0 0.0
      %921 = vmatpush1.msra.mxu0 0.0
      %922 = vmatprep.subr.mxu0 0.0
      %923 = vmatpush1.msra.mxu0 0.0
      %924 = vmatprep.subr.mxu0 0.0
      %925 = vmatpush1.msra.mxu0 0.0
      %926 = vmatprep.subr.mxu0 0.0
      %927 = vmatpush1.msra.mxu0 0.0
      %928 = vmatprep.subr.mxu0 0.0
      %929 = vmatpush1.msra.mxu0 %v857
      %930 = vmatprep.subr.mxu0 0.0
      %931 = vmatpush1.msra.mxu0 %v856
      %932 = vmatprep.subr.mxu0 0.0
      %933 = vmatpush1.msra.mxu0 %v855
      %934 = vmatprep.subr.mxu0 0.0
      %935 = vmatpush1.msra.mxu0 %v854
      %936 = vmatprep.subr.mxu0 0.0
      %937 = vmatpush2.msra.mxu0 0.0
      %938 = vmatprep.subr.mxu0 0.0
      %939 = vmatpush2.msra.mxu0 0.0
      %940 = vmatprep.subr.mxu0 0.0
      %941 = vmatpush2.msra.mxu0 0.0
      %942 = vmatprep.subr.mxu0 0.0
      %943 = vmatpush2.msra.mxu0 0.0
      %944 = vmatprep.subr.mxu0 0.0
      %945 = vmatpush2.msra.mxu0 0.0
      %946 = vmatprep.subr.mxu0 0.0
      %947 = vmatpush2.msra.mxu0 0.0
      %948 = vmatprep.subr.mxu0 0.0
      %949 = vmatpush2.msra.mxu0 0.0
      %950 = vmatprep.subr.mxu0 0.0
      %951 = vmatpush2.msra.mxu0 0.0
      %952 = vmatprep.subr.mxu0 0.0
      %953 = vmatpush2.msra.mxu0 0.0
      %954 = vmatprep.subr.mxu0 0.0
      %955 = vmatpush2.msra.mxu0 0.0
      %956 = vmatprep.subr.mxu0 0.0
      %957 = vmatpush2.msra.mxu0 0.0
      %958 = vmatprep.subr.mxu0 0.0
      %959 = vmatpush2.msra.mxu0 0.0
      %960 = vmatprep.subr.mxu0 0.0
      %961 = vmatpush2.msra.mxu0 0.0
      %962 = vmatprep.subr.mxu0 0.0
      %963 = vmatpush2.msra.mxu0 0.0
      %964 = vmatprep.subr.mxu0 0.0
      %965 = vmatpush2.msra.mxu0 0.0
      %966 = vmatprep.subr.mxu0 0.0
      %967 = vmatpush2.msra.mxu0 0.0
      %968 = vmatprep.mubr.f32.mxu0 0.0
      %969 = vmatmul.mubr.f32.gmra.mxu0 %v866
      %v970 = vpop.f32.mrf.mxu0
      %v971 = vadd.f32 %v863, %v970
      %v972 = vpop.f32.mrf.mxu0
      %973 = vmatprep.mubr.f32.mxu0 0.0
      %974 = vmatmul.mubr.f32.gmra.mxu0 %v869
      %v975 = vpop.f32.mrf.mxu0
      %v976 = vadd.f32 %v863, %v975
      %v977 = vpop.f32.mrf.mxu0
      %978 = vmatprep.mubr.f32.mxu0 0.0
      %979 = vmatmul.mubr.f32.gmra.mxu0 %v872
      %v980 = vpop.f32.mrf.mxu0
      %v981 = vadd.f32 %v863, %v980
      %v982 = vpop.f32.mrf.mxu0
      %983 = vmatprep.mubr.f32.mxu0 0.0
      %984 = vmatmul.mubr.f32.gmra.mxu0 %v875
      %v985 = vpop.f32.mrf.mxu0
      %v986 = vadd.f32 %v863, %v985
      %v987 = vpop.f32.mrf.mxu0
      %988 = vmatprep.mubr.f32.mxu0 0.0
      %989 = vmatmul.mubr.f32.gmra.mxu0 %v878
      %v990 = vpop.f32.mrf.mxu0
      %v991 = vadd.f32 %v863, %v990
      %v992 = vpop.f32.mrf.mxu0
      %993 = vmatprep.mubr.f32.mxu0 0.0
      %994 = vmatmul.mubr.f32.gmra.mxu0 %v881
      %v995 = vpop.f32.mrf.mxu0
      %v996 = vadd.f32 %v863, %v995
      %v997 = vpop.f32.mrf.mxu0
      %998 = vmatprep.mubr.f32.mxu0 0.0
      %999 = vmatmul.mubr.f32.gmra.mxu0 %v884
      %v1000 = vpop.f32.mrf.mxu0
      %v1001 = vadd.f32 %v863, %v1000
      %v1002 = vpop.f32.mrf.mxu0
      %1003 = vmatprep.mubr.f32.mxu0 0.0
      %1004 = vmatmul.mubr.f32.gmra.mxu0 %v887
      %v1005 = vpop.f32.mrf.mxu0
      %v1006 = vadd.f32 %v863, %v1005
      %v1007 = vpop.f32.mrf.mxu0
      %1008 = vmatprep.mubr.f32.mxu0 0.0
      %1009 = vmatmul.mubr.f32.gmra.mxu0 %v890
      %v1010 = vpop.f32.mrf.mxu0
      %v1011 = vadd.f32 %v863, %v1010
      %v1012 = vpop.f32.mrf.mxu0
      %1013 = vmatprep.mubr.f32.mxu0 0.0
      %1014 = vmatmul.mubr.f32.gmra.mxu0 %v893
      %v1015 = vpop.f32.mrf.mxu0
      %v1016 = vadd.f32 %v863, %v1015
      %v1017 = vpop.f32.mrf.mxu0
      %1018 = vmatprep.mubr.f32.mxu0 0.0
      %1019 = vmatmul.mubr.f32.gmra.mxu0 %v896
      %v1020 = vpop.f32.mrf.mxu0
      %v1021 = vadd.f32 %v863, %v1020
      %v1022 = vpop.f32.mrf.mxu0
      %1023 = vmatprep.mubr.f32.mxu0 0.0
      %1024 = vmatmul.mubr.f32.gmra.mxu0 %v899
      %v1025 = vpop.f32.mrf.mxu0
      %v1026 = vadd.f32 %v863, %v1025
      %v1027 = vpop.f32.mrf.mxu0
      %1028 = vmatprep.mubr.f32.mxu0 0.0
      %1029 = vmatmul.mubr.f32.gmra.mxu0 %v902
      %v1030 = vpop.f32.mrf.mxu0
      %v1031 = vadd.f32 %v863, %v1030
      %v1032 = vpop.f32.mrf.mxu0
      %1033 = vdwg.mxu0
      %vm1034 = vcmp.gt.f32.partialorder %v971, 0.0
      %vm1035 = vcmp.gt.f32.partialorder %v976, 0.0
      %vm1036 = vcmp.gt.f32.partialorder %v981, 0.0
      %vm1037 = vcmp.gt.f32.partialorder %v986, 0.0
      %vm1038 = vcmp.gt.f32.partialorder %v991, 0.0
      %vm1039 = vcmp.gt.f32.partialorder %v996, 0.0
      %vm1040 = vcmp.gt.f32.partialorder %v1001, 0.0
      %vm1041 = vcmp.gt.f32.partialorder %v1006, 0.0
      %vm1042 = vcmp.gt.f32.partialorder %v1011, 0.0
      %vm1043 = vcmp.gt.f32.partialorder %v1016, 0.0
      %vm1044 = vcmp.gt.f32.partialorder %v1021, 0.0
      %vm1045 = vcmp.gt.f32.partialorder %v1026, 0.0
      %vm1046 = vcmp.gt.f32.partialorder %v1031, 0.0
      %v1047 = vmul.f32 %v971, 0.2
      %v1048 = vmul.f32 %v976, 0.2
      %v1049 = vmul.f32 %v981, 0.2
      %v1050 = vmul.f32 %v986, 0.2
      %v1051 = vmul.f32 %v991, 0.2
      %v1052 = vmul.f32 %v996, 0.2
      %v1053 = vmul.f32 %v1001, 0.2
      %v1054 = vmul.f32 %v1006, 0.2
      %v1055 = vmul.f32 %v1011, 0.2
      %v1056 = vmul.f32 %v1016, 0.2
      %v1057 = vmul.f32 %v1021, 0.2
      %v1058 = vmul.f32 %v1026, 0.2
      %v1059 = vmul.f32 %v1031, 0.2
      %v1060 = vsel %vm1034, %v971, %v1047
      %v1061 = vsel %vm1035, %v976, %v1048
      %v1062 = vsel %vm1036, %v981, %v1049
      %v1063 = vsel %vm1037, %v986, %v1050
      %v1064 = vsel %vm1038, %v991, %v1051
      %v1065 = vsel %vm1039, %v996, %v1052
      %v1066 = vsel %vm1040, %v1001, %v1053
      %v1067 = vsel %vm1041, %v1006, %v1054
      %v1068 = vsel %vm1042, %v1011, %v1055
      %v1069 = vsel %vm1043, %v1016, %v1056
      %v1070 = vsel %vm1044, %v1021, %v1057
      %v1071 = vsel %vm1045, %v1026, %v1058
      %v1072 = vsel %vm1046, %v1031, %v1059
      %v1073 = vadd.f32 %v1060, %v841
      %v1074 = vadd.f32 %v1061, %v842
      %v1075 = vadd.f32 %v1062, %v843
      %v1076 = vadd.f32 %v1063, %v844
      %v1077 = vadd.f32 %v1064, %v845
      %v1078 = vadd.f32 %v1065, %v846
      %v1079 = vadd.f32 %v1066, %v847
      %v1080 = vadd.f32 %v1067, %v848
      %v1081 = vadd.f32 %v1068, %v849
      %v1082 = vadd.f32 %v1069, %v850
      %v1083 = vadd.f32 %v1070, %v851
      %v1084 = vadd.f32 %v1071, %v852
      %v1085 = vadd.f32 %v1072, %v853
      %v1086 = vld [vmem:[%s7] sm:$0xff]
      %v1087 = vld [vmem:[%s7 + $0x8] sm:$0xff]
      %v1088 = vld [vmem:[%s7 + $0x10] sm:$0xff]
      %v1089 = vld [vmem:[%s7 + $0x18] sm:$0xff]
      %v1090 = vld [vmem:[%s8] sm:$0x1]
      %v1092 = vlaneseq
      %v1093 = vshrl.u32 %v1092, 7
      %v1094 = vsub.s32 0, %v1093
      %v1095 = vrot.slane %v1090, %v1094
      %v1098 = vsel %vm632, %v1073, 0
      %v1101 = vsel %vm632, %v1074, 0
      %v1104 = vsel %vm632, %v1075, 0
      %v1107 = vsel %vm632, %v1076, 0
      %v1110 = vsel %vm632, %v1077, 0
      %v1113 = vsel %vm632, %v1078, 0
      %v1116 = vsel %vm632, %v1079, 0
      %v1119 = vsel %vm632, %v1080, 0
      %v1122 = vsel %vm632, %v1081, 0
      %v1125 = vsel %vm632, %v1082, 0
      %v1128 = vsel %vm632, %v1083, 0
      %v1131 = vsel %vm632, %v1084, 0
      %v1134 = vsel %vm632, %v1085, 0
      %1136 = vmatprep.subr.mxu0 0.0
      %1137 = vmatpush1.msra.mxu0 0.0
      %1138 = vmatprep.subr.mxu0 0.0
      %1139 = vmatpush1.msra.mxu0 0.0
      %1140 = vmatprep.subr.mxu0 0.0
      %1141 = vmatpush1.msra.mxu0 0.0
      %1142 = vmatprep.subr.mxu0 0.0
      %1143 = vmatpush1.msra.mxu0 0.0
      %1144 = vmatprep.subr.mxu0 0.0
      %1145 = vmatpush1.msra.mxu0 0.0
      %1146 = vmatprep.subr.mxu0 0.0
      %1147 = vmatpush1.msra.mxu0 0.0
      %1148 = vmatprep.subr.mxu0 0.0
      %1149 = vmatpush1.msra.mxu0 0.0
      %1150 = vmatprep.subr.mxu0 0.0
      %1151 = vmatpush1.msra.mxu0 0.0
      %1152 = vmatprep.subr.mxu0 0.0
      %1153 = vmatpush1.msra.mxu0 0.0
      %1154 = vmatprep.subr.mxu0 0.0
      %1155 = vmatpush1.msra.mxu0 0.0
      %1156 = vmatprep.subr.mxu0 0.0
      %1157 = vmatpush1.msra.mxu0 0.0
      %1158 = vmatprep.subr.mxu0 0.0
      %1159 = vmatpush1.msra.mxu0 0.0
      %1160 = vmatprep.subr.mxu0 0.0
      %1161 = vmatpush1.msra.mxu0 %v1089
      %1162 = vmatprep.subr.mxu0 0.0
      %1163 = vmatpush1.msra.mxu0 %v1088
      %1164 = vmatprep.subr.mxu0 0.0
      %1165 = vmatpush1.msra.mxu0 %v1087
      %1166 = vmatprep.subr.mxu0 0.0
      %1167 = vmatpush1.msra.mxu0 %v1086
      %1168 = vmatprep.subr.mxu0 0.0
      %1169 = vmatpush2.msra.mxu0 0.0
      %1170 = vmatprep.subr.mxu0 0.0
      %1171 = vmatpush2.msra.mxu0 0.0
      %1172 = vmatprep.subr.mxu0 0.0
      %1173 = vmatpush2.msra.mxu0 0.0
      %1174 = vmatprep.subr.mxu0 0.0
      %1175 = vmatpush2.msra.mxu0 0.0
      %1176 = vmatprep.subr.mxu0 0.0
      %1177 = vmatpush2.msra.mxu0 0.0
      %1178 = vmatprep.subr.mxu0 0.0
      %1179 = vmatpush2.msra.mxu0 0.0
      %1180 = vmatprep.subr.mxu0 0.0
      %1181 = vmatpush2.msra.mxu0 0.0
      %1182 = vmatprep.subr.mxu0 0.0
      %1183 = vmatpush2.msra.mxu0 0.0
      %1184 = vmatprep.subr.mxu0 0.0
      %1185 = vmatpush2.msra.mxu0 0.0
      %1186 = vmatprep.subr.mxu0 0.0
      %1187 = vmatpush2.msra.mxu0 0.0
      %1188 = vmatprep.subr.mxu0 0.0
      %1189 = vmatpush2.msra.mxu0 0.0
      %1190 = vmatprep.subr.mxu0 0.0
      %1191 = vmatpush2.msra.mxu0 0.0
      %1192 = vmatprep.subr.mxu0 0.0
      %1193 = vmatpush2.msra.mxu0 0.0
      %1194 = vmatprep.subr.mxu0 0.0
      %1195 = vmatpush2.msra.mxu0 0.0
      %1196 = vmatprep.subr.mxu0 0.0
      %1197 = vmatpush2.msra.mxu0 0.0
      %1198 = vmatprep.subr.mxu0 0.0
      %1199 = vmatpush2.msra.mxu0 0.0
      %1200 = vmatprep.mubr.f32.mxu0 0.0
      %1201 = vmatmul.mubr.f32.gmra.mxu0 %v1098
      %v1202 = vpop.f32.mrf.mxu0
      %v1203 = vadd.f32 %v1095, %v1202
      %v1204 = vpop.f32.mrf.mxu0
      %1205 = vmatprep.mubr.f32.mxu0 0.0
      %1206 = vmatmul.mubr.f32.gmra.mxu0 %v1101
      %v1207 = vpop.f32.mrf.mxu0
      %v1208 = vadd.f32 %v1095, %v1207
      %v1209 = vpop.f32.mrf.mxu0
      %1210 = vmatprep.mubr.f32.mxu0 0.0
      %1211 = vmatmul.mubr.f32.gmra.mxu0 %v1104
      %v1212 = vpop.f32.mrf.mxu0
      %v1213 = vadd.f32 %v1095, %v1212
      %v1214 = vpop.f32.mrf.mxu0
      %1215 = vmatprep.mubr.f32.mxu0 0.0
      %1216 = vmatmul.mubr.f32.gmra.mxu0 %v1107
      %v1217 = vpop.f32.mrf.mxu0
      %v1218 = vadd.f32 %v1095, %v1217
      %v1219 = vpop.f32.mrf.mxu0
      %1220 = vmatprep.mubr.f32.mxu0 0.0
      %1221 = vmatmul.mubr.f32.gmra.mxu0 %v1110
      %v1222 = vpop.f32.mrf.mxu0
      %v1223 = vadd.f32 %v1095, %v1222
      %v1224 = vpop.f32.mrf.mxu0
      %1225 = vmatprep.mubr.f32.mxu0 0.0
      %1226 = vmatmul.mubr.f32.gmra.mxu0 %v1113
      %v1227 = vpop.f32.mrf.mxu0
      %v1228 = vadd.f32 %v1095, %v1227
      %v1229 = vpop.f32.mrf.mxu0
      %1230 = vmatprep.mubr.f32.mxu0 0.0
      %1231 = vmatmul.mubr.f32.gmra.mxu0 %v1116
      %v1232 = vpop.f32.mrf.mxu0
      %v1233 = vadd.f32 %v1095, %v1232
      %v1234 = vpop.f32.mrf.mxu0
      %1235 = vmatprep.mubr.f32.mxu0 0.0
      %1236 = vmatmul.mubr.f32.gmra.mxu0 %v1119
      %v1237 = vpop.f32.mrf.mxu0
      %v1238 = vadd.f32 %v1095, %v1237
      %v1239 = vpop.f32.mrf.mxu0
      %1240 = vmatprep.mubr.f32.mxu0 0.0
      %1241 = vmatmul.mubr.f32.gmra.mxu0 %v1122
      %v1242 = vpop.f32.mrf.mxu0
      %v1243 = vadd.f32 %v1095, %v1242
      %v1244 = vpop.f32.mrf.mxu0
      %1245 = vmatprep.mubr.f32.mxu0 0.0
      %1246 = vmatmul.mubr.f32.gmra.mxu0 %v1125
      %v1247 = vpop.f32.mrf.mxu0
      %v1248 = vadd.f32 %v1095, %v1247
      %v1249 = vpop.f32.mrf.mxu0
      %1250 = vmatprep.mubr.f32.mxu0 0.0
      %1251 = vmatmul.mubr.f32.gmra.mxu0 %v1128
      %v1252 = vpop.f32.mrf.mxu0
      %v1253 = vadd.f32 %v1095, %v1252
      %v1254 = vpop.f32.mrf.mxu0
      %1255 = vmatprep.mubr.f32.mxu0 0.0
      %1256 = vmatmul.mubr.f32.gmra.mxu0 %v1131
      %v1257 = vpop.f32.mrf.mxu0
      %v1258 = vadd.f32 %v1095, %v1257
      %v1259 = vpop.f32.mrf.mxu0
      %1260 = vmatprep.mubr.f32.mxu0 0.0
      %1261 = vmatmul.mubr.f32.gmra.mxu0 %v1134
      %v1262 = vpop.f32.mrf.mxu0
      %v1263 = vadd.f32 %v1095, %v1262
      %v1264 = vpop.f32.mrf.mxu0
      %1265 = vdwg.mxu0
      %vm1266 = vcmp.gt.f32.partialorder %v1203, 0.0
      %vm1267 = vcmp.gt.f32.partialorder %v1208, 0.0
      %vm1268 = vcmp.gt.f32.partialorder %v1213, 0.0
      %vm1269 = vcmp.gt.f32.partialorder %v1218, 0.0
      %vm1270 = vcmp.gt.f32.partialorder %v1223, 0.0
      %vm1271 = vcmp.gt.f32.partialorder %v1228, 0.0
      %vm1272 = vcmp.gt.f32.partialorder %v1233, 0.0
      %vm1273 = vcmp.gt.f32.partialorder %v1238, 0.0
      %vm1274 = vcmp.gt.f32.partialorder %v1243, 0.0
      %vm1275 = vcmp.gt.f32.partialorder %v1248, 0.0
      %vm1276 = vcmp.gt.f32.partialorder %v1253, 0.0
      %vm1277 = vcmp.gt.f32.partialorder %v1258, 0.0
      %vm1278 = vcmp.gt.f32.partialorder %v1263, 0.0
      %v1279 = vmul.f32 %v1203, 0.2
      %v1280 = vmul.f32 %v1208, 0.2
      %v1281 = vmul.f32 %v1213, 0.2
      %v1282 = vmul.f32 %v1218, 0.2
      %v1283 = vmul.f32 %v1223, 0.2
      %v1284 = vmul.f32 %v1228, 0.2
      %v1285 = vmul.f32 %v1233, 0.2
      %v1286 = vmul.f32 %v1238, 0.2
      %v1287 = vmul.f32 %v1243, 0.2
      %v1288 = vmul.f32 %v1248, 0.2
      %v1289 = vmul.f32 %v1253, 0.2
      %v1290 = vmul.f32 %v1258, 0.2
      %v1291 = vmul.f32 %v1263, 0.2
      %v1292 = vsel %vm1266, %v1203, %v1279
      %v1293 = vsel %vm1267, %v1208, %v1280
      %v1294 = vsel %vm1268, %v1213, %v1281
      %v1295 = vsel %vm1269, %v1218, %v1282
      %v1296 = vsel %vm1270, %v1223, %v1283
      %v1297 = vsel %vm1271, %v1228, %v1284
      %v1298 = vsel %vm1272, %v1233, %v1285
      %v1299 = vsel %vm1273, %v1238, %v1286
      %v1300 = vsel %vm1274, %v1243, %v1287
      %v1301 = vsel %vm1275, %v1248, %v1288
      %v1302 = vsel %vm1276, %v1253, %v1289
      %v1303 = vsel %vm1277, %v1258, %v1290
      %v1304 = vsel %vm1278, %v1263, %v1291
      %v1305 = vadd.f32 %v1292, %v1073
      %v1306 = vadd.f32 %v1293, %v1074
      %v1307 = vadd.f32 %v1294, %v1075
      %v1308 = vadd.f32 %v1295, %v1076
      %v1309 = vadd.f32 %v1296, %v1077
      %v1310 = vadd.f32 %v1297, %v1078
      %v1311 = vadd.f32 %v1298, %v1079
      %v1312 = vadd.f32 %v1299, %v1080
      %v1313 = vadd.f32 %v1300, %v1081
      %v1314 = vadd.f32 %v1301, %v1082
      %v1315 = vadd.f32 %v1302, %v1083
      %v1316 = vadd.f32 %v1303, %v1084
      %v1317 = vadd.f32 %v1304, %v1085
      %v1318 = vld [vmem:[%s9] sm:$0xff]
      %v1319 = vld [vmem:[%s9 + $0x8] sm:$0xff]
      %v1320 = vld [vmem:[%s9 + $0x10] sm:$0xff]
      %v1321 = vld [vmem:[%s9 + $0x18] sm:$0xff]
      %v1322 = vld [vmem:[%s10] sm:$0x1]
      %v1324 = vlaneseq
      %v1325 = vshrl.u32 %v1324, 7
      %v1326 = vsub.s32 0, %v1325
      %v1327 = vrot.slane %v1322, %v1326
      %v1330 = vsel %vm632, %v1305, 0
      %v1333 = vsel %vm632, %v1306, 0
      %v1336 = vsel %vm632, %v1307, 0
      %v1339 = vsel %vm632, %v1308, 0
      %v1342 = vsel %vm632, %v1309, 0
      %v1345 = vsel %vm632, %v1310, 0
      %v1348 = vsel %vm632, %v1311, 0
      %v1351 = vsel %vm632, %v1312, 0
      %v1354 = vsel %vm632, %v1313, 0
      %v1357 = vsel %vm632, %v1314, 0
      %v1360 = vsel %vm632, %v1315, 0
      %v1363 = vsel %vm632, %v1316, 0
      %v1366 = vsel %vm632, %v1317, 0
      %1368 = vmatprep.subr.mxu0 0.0
      %1369 = vmatpush1.msra.mxu0 0.0
      %1370 = vmatprep.subr.mxu0 0.0
      %1371 = vmatpush1.msra.mxu0 0.0
      %1372 = vmatprep.subr.mxu0 0.0
      %1373 = vmatpush1.msra.mxu0 0.0
      %1374 = vmatprep.subr.mxu0 0.0
      %1375 = vmatpush1.msra.mxu0 0.0
      %1376 = vmatprep.subr.mxu0 0.0
      %1377 = vmatpush1.msra.mxu0 0.0
      %1378 = vmatprep.subr.mxu0 0.0
      %1379 = vmatpush1.msra.mxu0 0.0
      %1380 = vmatprep.subr.mxu0 0.0
      %1381 = vmatpush1.msra.mxu0 0.0
      %1382 = vmatprep.subr.mxu0 0.0
      %1383 = vmatpush1.msra.mxu0 0.0
      %1384 = vmatprep.subr.mxu0 0.0
      %1385 = vmatpush1.msra.mxu0 0.0
      %1386 = vmatprep.subr.mxu0 0.0
      %1387 = vmatpush1.msra.mxu0 0.0
      %1388 = vmatprep.subr.mxu0 0.0
      %1389 = vmatpush1.msra.mxu0 0.0
      %1390 = vmatprep.subr.mxu0 0.0
      %1391 = vmatpush1.msra.mxu0 0.0
      %1392 = vmatprep.subr.mxu0 0.0
      %1393 = vmatpush1.msra.mxu0 %v1321
      %1394 = vmatprep.subr.mxu0 0.0
      %1395 = vmatpush1.msra.mxu0 %v1320
      %1396 = vmatprep.subr.mxu0 0.0
      %1397 = vmatpush1.msra.mxu0 %v1319
      %1398 = vmatprep.subr.mxu0 0.0
      %1399 = vmatpush1.msra.mxu0 %v1318
      %1400 = vmatprep.subr.mxu0 0.0
      %1401 = vmatpush2.msra.mxu0 0.0
      %1402 = vmatprep.subr.mxu0 0.0
      %1403 = vmatpush2.msra.mxu0 0.0
      %1404 = vmatprep.subr.mxu0 0.0
      %1405 = vmatpush2.msra.mxu0 0.0
      %1406 = vmatprep.subr.mxu0 0.0
      %1407 = vmatpush2.msra.mxu0 0.0
      %1408 = vmatprep.subr.mxu0 0.0
      %1409 = vmatpush2.msra.mxu0 0.0
      %1410 = vmatprep.subr.mxu0 0.0
      %1411 = vmatpush2.msra.mxu0 0.0
      %1412 = vmatprep.subr.mxu0 0.0
      %1413 = vmatpush2.msra.mxu0 0.0
      %1414 = vmatprep.subr.mxu0 0.0
      %1415 = vmatpush2.msra.mxu0 0.0
      %1416 = vmatprep.subr.mxu0 0.0
      %1417 = vmatpush2.msra.mxu0 0.0
      %1418 = vmatprep.subr.mxu0 0.0
      %1419 = vmatpush2.msra.mxu0 0.0
      %1420 = vmatprep.subr.mxu0 0.0
      %1421 = vmatpush2.msra.mxu0 0.0
      %1422 = vmatprep.subr.mxu0 0.0
      %1423 = vmatpush2.msra.mxu0 0.0
      %1424 = vmatprep.subr.mxu0 0.0
      %1425 = vmatpush2.msra.mxu0 0.0
      %1426 = vmatprep.subr.mxu0 0.0
      %1427 = vmatpush2.msra.mxu0 0.0
      %1428 = vmatprep.subr.mxu0 0.0
      %1429 = vmatpush2.msra.mxu0 0.0
      %1430 = vmatprep.subr.mxu0 0.0
      %1431 = vmatpush2.msra.mxu0 0.0
      %1432 = vmatprep.mubr.f32.mxu0 0.0
      %1433 = vmatmul.mubr.f32.gmra.mxu0 %v1330
      %v1434 = vpop.f32.mrf.mxu0
      %v1435 = vadd.f32 %v1327, %v1434
      %v1436 = vpop.f32.mrf.mxu0
      %1437 = vmatprep.mubr.f32.mxu0 0.0
      %1438 = vmatmul.mubr.f32.gmra.mxu0 %v1333
      %v1439 = vpop.f32.mrf.mxu0
      %v1440 = vadd.f32 %v1327, %v1439
      %v1441 = vpop.f32.mrf.mxu0
      %1442 = vmatprep.mubr.f32.mxu0 0.0
      %1443 = vmatmul.mubr.f32.gmra.mxu0 %v1336
      %v1444 = vpop.f32.mrf.mxu0
      %v1445 = vadd.f32 %v1327, %v1444
      %v1446 = vpop.f32.mrf.mxu0
      %1447 = vmatprep.mubr.f32.mxu0 0.0
      %1448 = vmatmul.mubr.f32.gmra.mxu0 %v1339
      %v1449 = vpop.f32.mrf.mxu0
      %v1450 = vadd.f32 %v1327, %v1449
      %v1451 = vpop.f32.mrf.mxu0
      %1452 = vmatprep.mubr.f32.mxu0 0.0
      %1453 = vmatmul.mubr.f32.gmra.mxu0 %v1342
      %v1454 = vpop.f32.mrf.mxu0
      %v1455 = vadd.f32 %v1327, %v1454
      %v1456 = vpop.f32.mrf.mxu0
      %1457 = vmatprep.mubr.f32.mxu0 0.0
      %1458 = vmatmul.mubr.f32.gmra.mxu0 %v1345
      %v1459 = vpop.f32.mrf.mxu0
      %v1460 = vadd.f32 %v1327, %v1459
      %v1461 = vpop.f32.mrf.mxu0
      %1462 = vmatprep.mubr.f32.mxu0 0.0
      %1463 = vmatmul.mubr.f32.gmra.mxu0 %v1348
      %v1464 = vpop.f32.mrf.mxu0
      %v1465 = vadd.f32 %v1327, %v1464
      %v1466 = vpop.f32.mrf.mxu0
      %1467 = vmatprep.mubr.f32.mxu0 0.0
      %1468 = vmatmul.mubr.f32.gmra.mxu0 %v1351
      %v1469 = vpop.f32.mrf.mxu0
      %v1470 = vadd.f32 %v1327, %v1469
      %v1471 = vpop.f32.mrf.mxu0
      %1472 = vmatprep.mubr.f32.mxu0 0.0
      %1473 = vmatmul.mubr.f32.gmra.mxu0 %v1354
      %v1474 = vpop.f32.mrf.mxu0
      %v1475 = vadd.f32 %v1327, %v1474
      %v1476 = vpop.f32.mrf.mxu0
      %1477 = vmatprep.mubr.f32.mxu0 0.0
      %1478 = vmatmul.mubr.f32.gmra.mxu0 %v1357
      %v1479 = vpop.f32.mrf.mxu0
      %v1480 = vadd.f32 %v1327, %v1479
      %v1481 = vpop.f32.mrf.mxu0
      %1482 = vmatprep.mubr.f32.mxu0 0.0
      %1483 = vmatmul.mubr.f32.gmra.mxu0 %v1360
      %v1484 = vpop.f32.mrf.mxu0
      %v1485 = vadd.f32 %v1327, %v1484
      %v1486 = vpop.f32.mrf.mxu0
      %1487 = vmatprep.mubr.f32.mxu0 0.0
      %1488 = vmatmul.mubr.f32.gmra.mxu0 %v1363
      %v1489 = vpop.f32.mrf.mxu0
      %v1490 = vadd.f32 %v1327, %v1489
      %v1491 = vpop.f32.mrf.mxu0
      %1492 = vmatprep.mubr.f32.mxu0 0.0
      %1493 = vmatmul.mubr.f32.gmra.mxu0 %v1366
      %v1494 = vpop.f32.mrf.mxu0
      %v1495 = vadd.f32 %v1327, %v1494
      %v1496 = vpop.f32.mrf.mxu0
      %1497 = vdwg.mxu0
      %1498 = vst.msk [vmem:[%s388] sm:$0xff] %vm412, %v1435
      %1499 = vst.msk [vmem:[%s388 + $0x8] sm:$0xff] %vm412, %v1440
      %1500 = vst.msk [vmem:[%s388 + $0x10] sm:$0xff] %vm412, %v1445
      %1501 = vst.msk [vmem:[%s388 + $0x18] sm:$0xff] %vm412, %v1450
      %1502 = vst.msk [vmem:[%s388 + $0x20] sm:$0xff] %vm412, %v1455
      %1503 = vst.msk [vmem:[%s388 + $0x28] sm:$0xff] %vm412, %v1460
      %1504 = vst.msk [vmem:[%s388 + $0x30] sm:$0xff] %vm412, %v1465
      %1505 = vst.msk [vmem:[%s388 + $0x38] sm:$0xff] %vm412, %v1470
      %1506 = vst.msk [vmem:[%s388 + $0x40] sm:$0xff] %vm412, %v1475
      %1507 = vst.msk [vmem:[%s388 + $0x48] sm:$0xff] %vm412, %v1480
      %1508 = vst.msk [vmem:[%s388 + $0x50] sm:$0xff] %vm412, %v1485
      %1509 = vst.msk [vmem:[%s388 + $0x58] sm:$0xff] %vm412, %v1490
      %1510 = vst.msk [vmem:[%s388 + $0x60] sm:$0xff] %vm412, %v1495
      %s1511 = smul.u32 13, %s22
      %p1512 = scmp.lt.s32.totalorder %s1511, 25
      %s1513 = scalar_select %p1512, %s1511, 25
      %s1514 = smul.addr %s1513, 8
      %s1515 = scalar_lea.vmem %s11, %s1514
      // Predicated region
      $region65: #{tpu_custom_call.1} parent=63 // pred_check
        %p1516 = pneg %p276
      $region66: #{tpu_custom_call.1} parent=63 // pred_check_branch
        %1518 = sbr.rel (%p1516) target = $region68
      $region67: #{tpu_custom_call.1} parent=63 // pred_region
        %s1519 = smul.u32 13, %s22
      $region68: #{tpu_custom_call.1} parent=63 // pred_fallthru
        _
    $region64: #{tpu_custom_call.1} parent=5 // pred_fallthru
      _
    %p1520 = scmp.le.s32.totalorder 2, %s17
    // Predicated region
    $region69: #{tpu_custom_call.1} parent=5 // pred_check
      %p1521 = pneg %p1520
    $region70: #{tpu_custom_call.1} parent=5 // pred_check_branch
      %1523 = sbr.rel (%p1521) target = $region72
    $region71: #{tpu_custom_call.1} parent=5 // pred_region
      %s1524 = ssub.s32 %s17, 2
      // Predicated region
      $region73: #{tpu_custom_call.1} parent=71 // pred_check
        %p1525 = pneg %p282
      $region74: #{tpu_custom_call.1} parent=71 // pred_check_branch
        %1527 = sbr.rel (%p1525) target = $region76
      $region75: #{tpu_custom_call.1} parent=71 // pred_region
        %s1528 = smul.u32 13, %s23
        %p1529 = scmp.lt.s32.totalorder %s1528, 25
        %s1530 = scalar_select %p1529, %s1528, 25
        %s1531 = smul.addr %s1530, 8
        %s1532 = scalar_lea.vmem %s11, %s1531
      $region76: #{tpu_custom_call.1} parent=71 // pred_fallthru
        _
    $region72: #{tpu_custom_call.1} parent=5 // pred_fallthru
      _
  $region6: #{tpu_custom_call.1} parent=0 // loop_footer
    %s21 = sadd.s32 1, %s17
  $region7: #{tpu_custom_call.1} parent=0 // loop_footer_branch
    %16 = sbr.rel target = $region3
  $region8: #{tpu_custom_call.1} parent=0 // loop_exit
    _

</llo_original>
